<compile_context>
chip_gen: v7x
topology: tpu7x:2x2x1
jax: 0.10.0
libtpu: 0.0.40
codegen_flags: <defaults>
</compile_context>

<pallas_src>
import functools

import jax
import jax.numpy as jnp
from jax.experimental import pallas as pl
from jax.experimental.pallas import tpu as pltpu


# ----------------------------------------------------------------------------
# Pallas kernels
# ----------------------------------------------------------------------------
def _stage1_kernel(xph_ref, w_ref, b_ref, mu_t_ref, std_t_ref, s_ref, low_ref,
                   *, transfer, eps):
    # xph_ref : (4, Hp, Wp, Cin) f32  -- 4 even/odd phases of the 1-padded input
    # w_ref   : (9, Cin, C1)   bf16   -- taps in (kh*3+kw) order
    # b_ref   : (1, C1)        f32
    # mu_t/std_t/s_ref : (1, 1, C1) f32
    # low_ref : (1, Ho, Wo, C1) f32
    Ho, Wo, C1 = low_ref.shape[1], low_ref.shape[2], low_ref.shape[3]
    Cin = xph_ref.shape[3]
    n = Ho * Wo

    # stride-2 3x3 conv: tap (kh, kw) reads phase 2*(kh%2)+(kw%2) at offset (kh//2, kw//2)
    acc = jnp.zeros((n, C1), jnp.float32)
    t = 0
    for kh in range(3):
        oh = kh // 2
        for kw in range(3):
            ow = kw // 2
            p = 2 * (kh % 2) + (kw % 2)
            patch = xph_ref[p, oh:oh + Ho, ow:ow + Wo, :]            # (Ho, Wo, Cin)
            acc = acc + jnp.dot(patch.reshape(n, Cin).astype(jnp.bfloat16),
                                w_ref[t], preferred_element_type=jnp.float32)
            t += 1
    acc = jnp.maximum(acc + b_ref[...], 0.0)                         # stage-1 backbone ReLU

    if transfer:
        # calc_mean_std: per-(N,C) mean and sqrt(unbiased var + eps), single pass,
        # rsqrt on the EUP instead of a VPU divide.
        ssum = jnp.sum(acc, axis=0, keepdims=True)                   # (1, C1)
        ssq = jnp.sum(acc * acc, axis=0, keepdims=True)
        mean = ssum * (1.0 / n)
        var = jnp.maximum(ssq - ssum * mean, 0.0) * (1.0 / (n - 1))  # torch unbiased var
        inv_std = jax.lax.rsqrt(var + eps)
        std = (var + eps) * inv_std                                  # = sqrt(var + eps)
        s = s_ref[0]                                                 # (1, C1)
        mu_mix = s * mean + (1.0 - s) * mu_t_ref[0]
        std_mix = s * std + (1.0 - s) * std_t_ref[0]
        # fold normalize + re-style into one per-channel affine -> one fma over (n, C1)
        scale = std_mix * inv_std                                    # (1, C1)
        shift = mu_mix - mean * scale                                # (1, C1)
        acc = jnp.maximum(acc * scale + shift, 0.0)                  # activation=ReLU

    low_ref[0] = acc.reshape(Ho, Wo, C1).astype(low_ref.dtype)


def _stage2_kernel(lowph_ref, w_ref, b_ref, wc_ref, bc_ref, a_ref, bt_ref,
                   feat_ref, out_ref):
    # lowph_ref : (4, Hp, Wp, C1) f32   phases of padded low-level feature
    # w_ref     : (9, C1, C2)  bf16
    # b_ref     : (1, C2)      f32
    # wc_ref    : (C2, K)      bf16     1x1 classifier weights
    # bc_ref    : (1, K)       f32      classifier bias
    # a_ref     : (Hout, Ho2)  bf16     H-resize weights
    # bt_ref    : (Wo2, Wout)  bf16     W-resize weights (transposed)
    # feat_ref  : (1, Ho2, Wo2, C2) f32
    # out_ref   : (1, K, Hout, Wout) f32   final logits, written directly in NCHW
    Ho2, Wo2, C2 = feat_ref.shape[1], feat_ref.shape[2], feat_ref.shape[3]
    C1 = lowph_ref.shape[3]
    K = out_ref.shape[1]
    n = Ho2 * Wo2

    acc = jnp.zeros((n, C2), jnp.float32)
    t = 0
    for kh in range(3):
        oh = kh // 2
        for kw in range(3):
            ow = kw // 2
            p = 2 * (kh % 2) + (kw % 2)
            patch = lowph_ref[p, oh:oh + Ho2, ow:ow + Wo2, :]        # (Ho2, Wo2, C1)
            acc = acc + jnp.dot(patch.reshape(n, C1).astype(jnp.bfloat16),
                                w_ref[t], preferred_element_type=jnp.float32)
            t += 1
    feat = jnp.maximum(acc + b_ref[...], 0.0)                        # (n, C2)
    feat_ref[0] = feat.reshape(Ho2, Wo2, C2).astype(feat_ref.dtype)

    # fused 1x1 classifier for ALL classes in one MXU matmul (replaces K lane reduces)
    logits = jnp.dot(feat.astype(jnp.bfloat16), wc_ref[...],
                     preferred_element_type=jnp.float32) + bc_ref[...]   # (n, K)
    logits3 = logits.reshape(Ho2, Wo2, K)

    a = a_ref[...]                                                   # hoisted out of loop
    bt = bt_ref[...]
    for k in range(K):
        lk = logits3[:, :, k]                                        # (Ho2, Wo2) lane extract
        # fused separable bilinear upsample: rows then columns, two small MXU
        # matmuls — no kron(A, B) matrix is ever materialized.
        tk = jnp.dot(a, lk.astype(jnp.bfloat16),
                     preferred_element_type=jnp.float32)             # (Hout, Wo2)
        rk = jnp.dot(tk.astype(jnp.bfloat16), bt,
                     preferred_element_type=jnp.float32)             # (Hout, Wout)
        out_ref[0, k] = rk.astype(out_ref.dtype)


# ----------------------------------------------------------------------------
# wrappers (glue)
# ----------------------------------------------------------------------------
_COMPILER_PARAMS = pltpu.CompilerParams(
    dimension_semantics=("parallel",),
    vmem_limit_bytes=32 * 1024 * 1024,
)


def _phase_split_pad(x_nhwc):
    """Pad by 1 and split into the 4 even/odd phases of a stride-2 3x3 conv.

    Returns (B*4, H//2+1, W//2+1, C); phase p = 2*(row%2) + (col%2).
    Single XLA pass; lets the kernel compute the strided conv with contiguous
    tap slices only, producing only Ho*Wo output pixels.
    """
    B, H, W, C = x_nhwc.shape
    xp = jnp.pad(x_nhwc, ((0, 0), (1, 1), (1, 1), (0, 0)))
    phases = [xp[:, a::2, b::2, :] for a in (0, 1) for b in (0, 1)]
    xph = jnp.stack(phases, axis=1)                                  # (B, 4, Hp, Wp, C)
    return xph.reshape(B * 4, H // 2 + 1, W // 2 + 1, C)


def _resize_matrix_1d(out_size, in_size):
    """F.interpolate(mode='bilinear', align_corners=False) weights along one axis."""
    scale = in_size / out_size
    i = jnp.arange(out_size, dtype=jnp.float32)
    src = jnp.clip((i + 0.5) * scale - 0.5, 0.0, in_size - 1.0)
    i0 = jnp.floor(src).astype(jnp.int32)
    i1 = jnp.minimum(i0 + 1, in_size - 1)
    frac = src - i0.astype(jnp.float32)
    rows = jnp.arange(out_size)
    m = jnp.zeros((out_size, in_size), jnp.float32)
    m = m.at[rows, i0].add(1.0 - frac)
    m = m.at[rows, i1].add(frac)
    return m


def stage1(x_nhwc, w1, b1, mu_t, std_t, s, *, transfer, eps=1e-5):
    B, H, W, Cin = x_nhwc.shape
    C1 = w1.shape[-1]
    Ho, Wo = H // 2, W // 2
    Hp, Wp = Ho + 1, Wo + 1
    xph = _phase_split_pad(x_nhwc)                                   # (B*4, Hp, Wp, Cin)
    w1r = w1.reshape(9, Cin, C1).astype(jnp.bfloat16)
    return pl.pallas_call(
        functools.partial(_stage1_kernel, transfer=transfer, eps=eps),
        out_shape=jax.ShapeDtypeStruct((B, Ho, Wo, C1), jnp.float32),
        grid=(B,),
        in_specs=[
            pl.BlockSpec((4, Hp, Wp, Cin), lambda b: (b, 0, 0, 0)),
            pl.BlockSpec((9, Cin, C1), lambda b: (0, 0, 0)),
            pl.BlockSpec((1, C1), lambda b: (0, 0)),
            pl.BlockSpec((1, 1, C1), lambda b: (b, 0, 0)),
            pl.BlockSpec((1, 1, C1), lambda b: (b, 0, 0)),
            pl.BlockSpec((1, 1, C1), lambda b: (b, 0, 0)),
        ],
        out_specs=pl.BlockSpec((1, Ho, Wo, C1), lambda b: (b, 0, 0, 0)),
        compiler_params=_COMPILER_PARAMS,
    )(xph, w1r, b1, mu_t, std_t, s)


def stage2_classify_upsample(low_nhwc, w2, b2, wc, bc, Hout, Wout):
    B, Hl, Wl, C1 = low_nhwc.shape
    C2 = w2.shape[-1]
    K = wc.shape[-1]
    Ho2, Wo2 = Hl // 2, Wl // 2
    Hp, Wp = Ho2 + 1, Wo2 + 1
    lowph = _phase_split_pad(low_nhwc)                               # (B*4, Hp, Wp, C1)
    w2r = w2.reshape(9, C1, C2).astype(jnp.bfloat16)
    wcr = wc.astype(jnp.bfloat16)                                    # (C2, K)
    bcr = bc.reshape(1, K).astype(jnp.float32)
    a = _resize_matrix_1d(Hout, Ho2).astype(jnp.bfloat16)            # (Hout, Ho2)
    bt = _resize_matrix_1d(Wout, Wo2).T.astype(jnp.bfloat16)         # (Wo2, Wout)
    return pl.pallas_call(
        _stage2_kernel,
        out_shape=(
            jax.ShapeDtypeStruct((B, Ho2, Wo2, C2), jnp.float32),    # features['out'] (NHWC)
            jax.ShapeDtypeStruct((B, K, Hout, Wout), jnp.float32),   # upsampled logits (NCHW)
        ),
        grid=(B,),
        in_specs=[
            pl.BlockSpec((4, Hp, Wp, C1), lambda b: (b, 0, 0, 0)),
            pl.BlockSpec((9, C1, C2), lambda b: (0, 0, 0)),
            pl.BlockSpec((1, C2), lambda b: (0, 0)),
            pl.BlockSpec((C2, K), lambda b: (0, 0)),
            pl.BlockSpec((1, K), lambda b: (0, 0)),
            pl.BlockSpec((Hout, Ho2), lambda b: (0, 0)),
            pl.BlockSpec((Wo2, Wout), lambda b: (0, 0)),
        ],
        out_specs=(
            pl.BlockSpec((1, Ho2, Wo2, C2), lambda b: (b, 0, 0, 0)),
            pl.BlockSpec((1, K, Hout, Wout), lambda b: (b, 0, 0, 0)),
        ),
        compiler_params=_COMPILER_PARAMS,
    )(lowph, w2r, b2, wcr, bcr, a, bt)


# ----------------------------------------------------------------------------
# _Segmentation.forward equivalent
# ----------------------------------------------------------------------------
def segmentation_forward(x_nchw, params, mu_t_f1, std_t_f1, s,
                         *, transfer=False, mix=False):
    B, Cin, H, W = x_nchw.shape
    x = jnp.transpose(x_nchw, (0, 2, 3, 1))                          # NCHW -> NHWC

    if transfer and not mix:
        # s = 0 reproduces the non-mix branch: std_t * norm + mu_t
        s = jnp.zeros_like(s)

    # kernel A: features['low_level'] = activation(AdaIN-mix(backbone(x, get1=True)))
    low = stage1(x, params["w1"], params["b1"], mu_t_f1, std_t_f1, s,
                 transfer=transfer)                                  # (B, H/2, W/2, C1)

    # kernel B: features['out'] = backbone(low, trunc1, get4); classifier; bilinear resize
    out_feat, output = stage2_classify_upsample(
        low, params["w2"], params["b2"], params["wc"], params["bc"], H, W)

    features = {
        "low_level": jnp.transpose(low, (0, 3, 1, 2)),               # NCHW for the caller
        "out": jnp.transpose(out_feat, (0, 3, 1, 2)),
    }
    return output, features                                          # output already NCHW


# ----------------------------------------------------------------------------
# main
# ----------------------------------------------------------------------------
if __name__ == "__main__":
    key = jax.random.PRNGKey(0)
    ks = jax.random.split(key, 8)

    B, Cin, H, W = 2, 3, 16, 16        # input image (NCHW)
    C1, C2, K = 16, 32, 8              # low-level ch, out ch, num classes

    x = jax.random.normal(ks[0], (B, Cin, H, W), jnp.float32)

    params = {
        "w1": 0.1 * jax.random.normal(ks[1], (3, 3, Cin, C1), jnp.float32),
        "b1": 0.01 * jnp.ones((1, C1), jnp.float32),
        "w2": 0.1 * jax.random.normal(ks[2], (3, 3, C1, C2), jnp.float32),
        "b2": 0.01 * jnp.ones((1, C2), jnp.float32),
        "wc": 0.1 * jax.random.normal(ks[3], (C2, K), jnp.float32),
        "bc": jnp.zeros((1, K), jnp.float32),
    }

    # target-domain statistics and mixing coefficients (torch.rand in the reference)
    mu_t = 0.5 * jax.random.normal(ks[4], (B, 1, C1), jnp.float32)
    std_t = jax.nn.softplus(jax.random.normal(ks[5], (B, 1, C1), jnp.float32)) + 0.5
    s = jax.random.uniform(ks[6], (B, 1, C1), jnp.float32)

    output, features = segmentation_forward(
        x, params, mu_t, std_t, s, transfer=True, mix=True)

    jax.block_until_ready(output)
    jax.block_until_ready(features["low_level"])
    jax.block_until_ready(features["out"])

    assert output.shape == (B, K, H, W)
    assert features["low_level"].shape == (B, C1, H // 2, W // 2)
    assert features["out"].shape == (B, C2, H // 4, W // 4)
    print("KERNEL_OK")
</pallas_src>

<mosaic_0001>
module attributes {stable_mosaic.version = 11 : i64} {
  func.func @_stage1_kernel(%arg0: i32, %arg1: memref<4x9x9x3xf32, #tpu.memory_space<vmem>>, %arg2: memref<9x3x16xbf16, #tpu.memory_space<vmem>>, %arg3: memref<1x16xf32, #tpu.memory_space<vmem>>, %arg4: memref<1x1x16xf32, #tpu.memory_space<vmem>>, %arg5: memref<1x1x16xf32, #tpu.memory_space<vmem>>, %arg6: memref<1x1x16xf32, #tpu.memory_space<vmem>>, %arg7: memref<1x8x8x16xf32, #tpu.memory_space<vmem>>) attributes {dimension_semantics = [#tpu.dimension_semantics<parallel>], iteration_bounds = array<i64: 2>, scalar_prefetch = 0 : i64, scratch_operands = 0 : i64, tpu.core_type = #tpu.core_type<tc>, window_params = [{transform_indices = @transform_0, window_bounds = array<i64: 4, 9, 9, 3>}, {pipeline_mode = #tpu.pipeline_mode<synchronous>, transform_indices = @transform_1, window_bounds = array<i64: 9, 3, 16>}, {pipeline_mode = #tpu.pipeline_mode<synchronous>, transform_indices = @transform_2, window_bounds = array<i64: 1, 16>}, {transform_indices = @transform_3, window_bounds = array<i64: 1, 1, 16>}, {transform_indices = @transform_4, window_bounds = array<i64: 1, 1, 16>}, {transform_indices = @transform_5, window_bounds = array<i64: 1, 1, 16>}, {transform_indices = @transform_6, window_bounds = array<i64: 1, 8, 8, 16>}]} {
    %cst = arith.constant 0.000000e+00 : f32
    %0 = vector.broadcast %cst : f32 to vector<64x16xf32>
    %c0 = arith.constant 0 : index
    %c0_0 = arith.constant 0 : index
    %c0_1 = arith.constant 0 : index
    %c0_2 = arith.constant 0 : index
    %1 = vector.load %arg1[%c0, %c0_0, %c0_1, %c0_2] : memref<4x9x9x3xf32, #tpu.memory_space<vmem>>, vector<1x8x8x3xf32>
    %2 = vector.shape_cast %1 : vector<1x8x8x3xf32> to vector<8x8x3xf32>
    %3 = vector.shape_cast %2 : vector<8x8x3xf32> to vector<64x3xf32>
    %4 = arith.truncf %3 : vector<64x3xf32> to vector<64x3xbf16>
    %c0_3 = arith.constant 0 : index
    %c0_4 = arith.constant 0 : index
    %c0_5 = arith.constant 0 : index
    %5 = vector.load %arg2[%c0_3, %c0_4, %c0_5] : memref<9x3x16xbf16, #tpu.memory_space<vmem>>, vector<1x3x16xbf16>
    %6 = vector.shape_cast %5 : vector<1x3x16xbf16> to vector<3x16xbf16>
    %cst_6 = arith.constant dense<0.000000e+00> : vector<64x16xf32>
    %7 = tpu.matmul %4, %6, %cst_6 {dimension_numbers = #tpu.dot_dimension_numbers<[1], [0], [0], [1], [0, 0, 1, 1], [], []>} : vector<64x3xbf16>, vector<3x16xbf16>, vector<64x16xf32> -> vector<64x16xf32>
    %8 = arith.addf %0, %7 : vector<64x16xf32>
    %c1 = arith.constant 1 : index
    %c0_7 = arith.constant 0 : index
    %c0_8 = arith.constant 0 : index
    %c0_9 = arith.constant 0 : index
    %9 = vector.load %arg1[%c1, %c0_7, %c0_8, %c0_9] : memref<4x9x9x3xf32, #tpu.memory_space<vmem>>, vector<1x8x8x3xf32>
    %10 = vector.shape_cast %9 : vector<1x8x8x3xf32> to vector<8x8x3xf32>
    %11 = vector.shape_cast %10 : vector<8x8x3xf32> to vector<64x3xf32>
    %12 = arith.truncf %11 : vector<64x3xf32> to vector<64x3xbf16>
    %c1_10 = arith.constant 1 : index
    %c0_11 = arith.constant 0 : index
    %c0_12 = arith.constant 0 : index
    %13 = vector.load %arg2[%c1_10, %c0_11, %c0_12] : memref<9x3x16xbf16, #tpu.memory_space<vmem>>, vector<1x3x16xbf16>
    %14 = vector.shape_cast %13 : vector<1x3x16xbf16> to vector<3x16xbf16>
    %cst_13 = arith.constant dense<0.000000e+00> : vector<64x16xf32>
    %15 = tpu.matmul %12, %14, %cst_13 {dimension_numbers = #tpu.dot_dimension_numbers<[1], [0], [0], [1], [0, 0, 1, 1], [], []>} : vector<64x3xbf16>, vector<3x16xbf16>, vector<64x16xf32> -> vector<64x16xf32>
    %16 = arith.addf %8, %15 : vector<64x16xf32>
    %c0_14 = arith.constant 0 : index
    %c0_15 = arith.constant 0 : index
    %c1_16 = arith.constant 1 : index
    %c0_17 = arith.constant 0 : index
    %17 = vector.load %arg1[%c0_14, %c0_15, %c1_16, %c0_17] : memref<4x9x9x3xf32, #tpu.memory_space<vmem>>, vector<1x8x8x3xf32>
    %18 = vector.shape_cast %17 : vector<1x8x8x3xf32> to vector<8x8x3xf32>
    %19 = vector.shape_cast %18 : vector<8x8x3xf32> to vector<64x3xf32>
    %20 = arith.truncf %19 : vector<64x3xf32> to vector<64x3xbf16>
    %c2 = arith.constant 2 : index
    %c0_18 = arith.constant 0 : index
    %c0_19 = arith.constant 0 : index
    %21 = vector.load %arg2[%c2, %c0_18, %c0_19] : memref<9x3x16xbf16, #tpu.memory_space<vmem>>, vector<1x3x16xbf16>
    %22 = vector.shape_cast %21 : vector<1x3x16xbf16> to vector<3x16xbf16>
    %cst_20 = arith.constant dense<0.000000e+00> : vector<64x16xf32>
    %23 = tpu.matmul %20, %22, %cst_20 {dimension_numbers = #tpu.dot_dimension_numbers<[1], [0], [0], [1], [0, 0, 1, 1], [], []>} : vector<64x3xbf16>, vector<3x16xbf16>, vector<64x16xf32> -> vector<64x16xf32>
    %24 = arith.addf %16, %23 : vector<64x16xf32>
    %c2_21 = arith.constant 2 : index
    %c0_22 = arith.constant 0 : index
    %c0_23 = arith.constant 0 : index
    %c0_24 = arith.constant 0 : index
    %25 = vector.load %arg1[%c2_21, %c0_22, %c0_23, %c0_24] : memref<4x9x9x3xf32, #tpu.memory_space<vmem>>, vector<1x8x8x3xf32>
    %26 = vector.shape_cast %25 : vector<1x8x8x3xf32> to vector<8x8x3xf32>
    %27 = vector.shape_cast %26 : vector<8x8x3xf32> to vector<64x3xf32>
    %28 = arith.truncf %27 : vector<64x3xf32> to vector<64x3xbf16>
    %c3 = arith.constant 3 : index
    %c0_25 = arith.constant 0 : index
    %c0_26 = arith.constant 0 : index
    %29 = vector.load %arg2[%c3, %c0_25, %c0_26] : memref<9x3x16xbf16, #tpu.memory_space<vmem>>, vector<1x3x16xbf16>
    %30 = vector.shape_cast %29 : vector<1x3x16xbf16> to vector<3x16xbf16>
    %cst_27 = arith.constant dense<0.000000e+00> : vector<64x16xf32>
    %31 = tpu.matmul %28, %30, %cst_27 {dimension_numbers = #tpu.dot_dimension_numbers<[1], [0], [0], [1], [0, 0, 1, 1], [], []>} : vector<64x3xbf16>, vector<3x16xbf16>, vector<64x16xf32> -> vector<64x16xf32>
    %32 = arith.addf %24, %31 : vector<64x16xf32>
    %c3_28 = arith.constant 3 : index
    %c0_29 = arith.constant 0 : index
    %c0_30 = arith.constant 0 : index
    %c0_31 = arith.constant 0 : index
    %33 = vector.load %arg1[%c3_28, %c0_29, %c0_30, %c0_31] : memref<4x9x9x3xf32, #tpu.memory_space<vmem>>, vector<1x8x8x3xf32>
    %34 = vector.shape_cast %33 : vector<1x8x8x3xf32> to vector<8x8x3xf32>
    %35 = vector.shape_cast %34 : vector<8x8x3xf32> to vector<64x3xf32>
    %36 = arith.truncf %35 : vector<64x3xf32> to vector<64x3xbf16>
    %c4 = arith.constant 4 : index
    %c0_32 = arith.constant 0 : index
    %c0_33 = arith.constant 0 : index
    %37 = vector.load %arg2[%c4, %c0_32, %c0_33] : memref<9x3x16xbf16, #tpu.memory_space<vmem>>, vector<1x3x16xbf16>
    %38 = vector.shape_cast %37 : vector<1x3x16xbf16> to vector<3x16xbf16>
    %cst_34 = arith.constant dense<0.000000e+00> : vector<64x16xf32>
    %39 = tpu.matmul %36, %38, %cst_34 {dimension_numbers = #tpu.dot_dimension_numbers<[1], [0], [0], [1], [0, 0, 1, 1], [], []>} : vector<64x3xbf16>, vector<3x16xbf16>, vector<64x16xf32> -> vector<64x16xf32>
    %40 = arith.addf %32, %39 : vector<64x16xf32>
    %c2_35 = arith.constant 2 : index
    %c0_36 = arith.constant 0 : index
    %c1_37 = arith.constant 1 : index
    %c0_38 = arith.constant 0 : index
    %41 = vector.load %arg1[%c2_35, %c0_36, %c1_37, %c0_38] : memref<4x9x9x3xf32, #tpu.memory_space<vmem>>, vector<1x8x8x3xf32>
    %42 = vector.shape_cast %41 : vector<1x8x8x3xf32> to vector<8x8x3xf32>
    %43 = vector.shape_cast %42 : vector<8x8x3xf32> to vector<64x3xf32>
    %44 = arith.truncf %43 : vector<64x3xf32> to vector<64x3xbf16>
    %c5 = arith.constant 5 : index
    %c0_39 = arith.constant 0 : index
    %c0_40 = arith.constant 0 : index
    %45 = vector.load %arg2[%c5, %c0_39, %c0_40] : memref<9x3x16xbf16, #tpu.memory_space<vmem>>, vector<1x3x16xbf16>
    %46 = vector.shape_cast %45 : vector<1x3x16xbf16> to vector<3x16xbf16>
    %cst_41 = arith.constant dense<0.000000e+00> : vector<64x16xf32>
    %47 = tpu.matmul %44, %46, %cst_41 {dimension_numbers = #tpu.dot_dimension_numbers<[1], [0], [0], [1], [0, 0, 1, 1], [], []>} : vector<64x3xbf16>, vector<3x16xbf16>, vector<64x16xf32> -> vector<64x16xf32>
    %48 = arith.addf %40, %47 : vector<64x16xf32>
    %c0_42 = arith.constant 0 : index
    %c1_43 = arith.constant 1 : index
    %c0_44 = arith.constant 0 : index
    %c0_45 = arith.constant 0 : index
    %49 = vector.load %arg1[%c0_42, %c1_43, %c0_44, %c0_45] : memref<4x9x9x3xf32, #tpu.memory_space<vmem>>, vector<1x8x8x3xf32>
    %50 = vector.shape_cast %49 : vector<1x8x8x3xf32> to vector<8x8x3xf32>
    %51 = vector.shape_cast %50 : vector<8x8x3xf32> to vector<64x3xf32>
    %52 = arith.truncf %51 : vector<64x3xf32> to vector<64x3xbf16>
    %c6 = arith.constant 6 : index
    %c0_46 = arith.constant 0 : index
    %c0_47 = arith.constant 0 : index
    %53 = vector.load %arg2[%c6, %c0_46, %c0_47] : memref<9x3x16xbf16, #tpu.memory_space<vmem>>, vector<1x3x16xbf16>
    %54 = vector.shape_cast %53 : vector<1x3x16xbf16> to vector<3x16xbf16>
    %cst_48 = arith.constant dense<0.000000e+00> : vector<64x16xf32>
    %55 = tpu.matmul %52, %54, %cst_48 {dimension_numbers = #tpu.dot_dimension_numbers<[1], [0], [0], [1], [0, 0, 1, 1], [], []>} : vector<64x3xbf16>, vector<3x16xbf16>, vector<64x16xf32> -> vector<64x16xf32>
    %56 = arith.addf %48, %55 : vector<64x16xf32>
    %c1_49 = arith.constant 1 : index
    %c1_50 = arith.constant 1 : index
    %c0_51 = arith.constant 0 : index
    %c0_52 = arith.constant 0 : index
    %57 = vector.load %arg1[%c1_49, %c1_50, %c0_51, %c0_52] : memref<4x9x9x3xf32, #tpu.memory_space<vmem>>, vector<1x8x8x3xf32>
    %58 = vector.shape_cast %57 : vector<1x8x8x3xf32> to vector<8x8x3xf32>
    %59 = vector.shape_cast %58 : vector<8x8x3xf32> to vector<64x3xf32>
    %60 = arith.truncf %59 : vector<64x3xf32> to vector<64x3xbf16>
    %c7 = arith.constant 7 : index
    %c0_53 = arith.constant 0 : index
    %c0_54 = arith.constant 0 : index
    %61 = vector.load %arg2[%c7, %c0_53, %c0_54] : memref<9x3x16xbf16, #tpu.memory_space<vmem>>, vector<1x3x16xbf16>
    %62 = vector.shape_cast %61 : vector<1x3x16xbf16> to vector<3x16xbf16>
    %cst_55 = arith.constant dense<0.000000e+00> : vector<64x16xf32>
    %63 = tpu.matmul %60, %62, %cst_55 {dimension_numbers = #tpu.dot_dimension_numbers<[1], [0], [0], [1], [0, 0, 1, 1], [], []>} : vector<64x3xbf16>, vector<3x16xbf16>, vector<64x16xf32> -> vector<64x16xf32>
    %64 = arith.addf %56, %63 : vector<64x16xf32>
    %c0_56 = arith.constant 0 : index
    %c1_57 = arith.constant 1 : index
    %c1_58 = arith.constant 1 : index
    %c0_59 = arith.constant 0 : index
    %65 = vector.load %arg1[%c0_56, %c1_57, %c1_58, %c0_59] : memref<4x9x9x3xf32, #tpu.memory_space<vmem>>, vector<1x8x8x3xf32>
    %66 = vector.shape_cast %65 : vector<1x8x8x3xf32> to vector<8x8x3xf32>
    %67 = vector.shape_cast %66 : vector<8x8x3xf32> to vector<64x3xf32>
    %68 = arith.truncf %67 : vector<64x3xf32> to vector<64x3xbf16>
    %c8 = arith.constant 8 : index
    %c0_60 = arith.constant 0 : index
    %c0_61 = arith.constant 0 : index
    %69 = vector.load %arg2[%c8, %c0_60, %c0_61] : memref<9x3x16xbf16, #tpu.memory_space<vmem>>, vector<1x3x16xbf16>
    %70 = vector.shape_cast %69 : vector<1x3x16xbf16> to vector<3x16xbf16>
    %cst_62 = arith.constant dense<0.000000e+00> : vector<64x16xf32>
    %71 = tpu.matmul %68, %70, %cst_62 {dimension_numbers = #tpu.dot_dimension_numbers<[1], [0], [0], [1], [0, 0, 1, 1], [], []>} : vector<64x3xbf16>, vector<3x16xbf16>, vector<64x16xf32> -> vector<64x16xf32>
    %72 = arith.addf %64, %71 : vector<64x16xf32>
    %c0_63 = arith.constant 0 : index
    %c0_64 = arith.constant 0 : index
    %73 = vector.load %arg3[%c0_63, %c0_64] : memref<1x16xf32, #tpu.memory_space<vmem>>, vector<1x16xf32>
    %74 = vector.broadcast %73 : vector<1x16xf32> to vector<64x16xf32>
    %75 = arith.addf %72, %74 : vector<64x16xf32>
    %cst_65 = arith.constant 0.000000e+00 : f32
    %76 = vector.broadcast %cst_65 : f32 to vector<64x16xf32>
    %77 = arith.maximumf %75, %76 : vector<64x16xf32>
    %cst_66 = arith.constant dense<0.000000e+00> : vector<16xf32>
    %78 = vector.multi_reduction <add>, %77, %cst_66 [0] : vector<64x16xf32> to vector<16xf32>
    %79 = vector.shape_cast %78 : vector<16xf32> to vector<1x16xf32>
    %80 = arith.mulf %77, %77 : vector<64x16xf32>
    %cst_67 = arith.constant dense<0.000000e+00> : vector<16xf32>
    %81 = vector.multi_reduction <add>, %80, %cst_67 [0] : vector<64x16xf32> to vector<16xf32>
    %82 = vector.shape_cast %81 : vector<16xf32> to vector<1x16xf32>
    %cst_68 = arith.constant 1.562500e-02 : f32
    %83 = vector.broadcast %cst_68 : f32 to vector<1x16xf32>
    %84 = arith.mulf %79, %83 : vector<1x16xf32>
    %85 = arith.mulf %79, %84 : vector<1x16xf32>
    %86 = arith.subf %82, %85 : vector<1x16xf32>
    %cst_69 = arith.constant 0.000000e+00 : f32
    %87 = vector.broadcast %cst_69 : f32 to vector<1x16xf32>
    %88 = arith.maximumf %86, %87 : vector<1x16xf32>
    %cst_70 = arith.constant 0.0158730168 : f32
    %89 = vector.broadcast %cst_70 : f32 to vector<1x16xf32>
    %90 = arith.mulf %88, %89 : vector<1x16xf32>
    %cst_71 = arith.constant 9.99999974E-6 : f32
    %91 = vector.broadcast %cst_71 : f32 to vector<1x16xf32>
    %92 = arith.addf %90, %91 : vector<1x16xf32>
    %93 = math.rsqrt %92 : vector<1x16xf32>
    %cst_72 = arith.constant 9.99999974E-6 : f32
    %94 = vector.broadcast %cst_72 : f32 to vector<1x16xf32>
    %95 = arith.addf %90, %94 : vector<1x16xf32>
    %96 = arith.mulf %95, %93 : vector<1x16xf32>
    %c0_73 = arith.constant 0 : index
    %c0_74 = arith.constant 0 : index
    %c0_75 = arith.constant 0 : index
    %97 = vector.load %arg6[%c0_73, %c0_74, %c0_75] : memref<1x1x16xf32, #tpu.memory_space<vmem>>, vector<1x1x16xf32>
    %98 = vector.shape_cast %97 : vector<1x1x16xf32> to vector<1x16xf32>
    %99 = arith.mulf %98, %84 : vector<1x16xf32>
    %cst_76 = arith.constant 1.000000e+00 : f32
    %100 = vector.broadcast %cst_76 : f32 to vector<1x16xf32>
    %101 = arith.subf %100, %98 : vector<1x16xf32>
    %c0_77 = arith.constant 0 : index
    %c0_78 = arith.constant 0 : index
    %c0_79 = arith.constant 0 : index
    %102 = vector.load %arg4[%c0_77, %c0_78, %c0_79] : memref<1x1x16xf32, #tpu.memory_space<vmem>>, vector<1x1x16xf32>
    %103 = vector.shape_cast %102 : vector<1x1x16xf32> to vector<1x16xf32>
    %104 = arith.mulf %101, %103 : vector<1x16xf32>
    %105 = arith.addf %99, %104 : vector<1x16xf32>
    %106 = arith.mulf %98, %96 : vector<1x16xf32>
    %cst_80 = arith.constant 1.000000e+00 : f32
    %107 = vector.broadcast %cst_80 : f32 to vector<1x16xf32>
    %108 = arith.subf %107, %98 : vector<1x16xf32>
    %c0_81 = arith.constant 0 : index
    %c0_82 = arith.constant 0 : index
    %c0_83 = arith.constant 0 : index
    %109 = vector.load %arg5[%c0_81, %c0_82, %c0_83] : memref<1x1x16xf32, #tpu.memory_space<vmem>>, vector<1x1x16xf32>
    %110 = vector.shape_cast %109 : vector<1x1x16xf32> to vector<1x16xf32>
    %111 = arith.mulf %108, %110 : vector<1x16xf32>
    %112 = arith.addf %106, %111 : vector<1x16xf32>
    %113 = arith.mulf %112, %93 : vector<1x16xf32>
    %114 = arith.mulf %84, %113 : vector<1x16xf32>
    %115 = arith.subf %105, %114 : vector<1x16xf32>
    %116 = vector.broadcast %113 : vector<1x16xf32> to vector<64x16xf32>
    %117 = arith.mulf %77, %116 : vector<64x16xf32>
    %118 = vector.broadcast %115 : vector<1x16xf32> to vector<64x16xf32>
    %119 = arith.addf %117, %118 : vector<64x16xf32>
    %cst_84 = arith.constant 0.000000e+00 : f32
    %120 = vector.broadcast %cst_84 : f32 to vector<64x16xf32>
    %121 = arith.maximumf %119, %120 : vector<64x16xf32>
    %122 = vector.shape_cast %121 : vector<64x16xf32> to vector<8x8x16xf32>
    %c0_85 = arith.constant 0 : index
    %c0_86 = arith.constant 0 : index
    %c0_87 = arith.constant 0 : index
    %c0_88 = arith.constant 0 : index
    %123 = vector.load %arg7[%c0_85, %c0_86, %c0_87, %c0_88] : memref<1x8x8x16xf32, #tpu.memory_space<vmem>>, vector<1x8x8x16xf32>
    %124 = vector.shape_cast %123 : vector<1x8x8x16xf32> to vector<8x8x16xf32>
    %125 = vector.shape_cast %122 : vector<8x8x16xf32> to vector<1x8x8x16xf32>
    tpu.vector_store %arg7[%c0_85, %c0_86, %c0_87, %c0_88], %125 {strides = array<i32>} : memref<1x8x8x16xf32, #tpu.memory_space<vmem>>, vector<1x8x8x16xf32>,
    return
  }
  func.func @transform_0(%arg0: i32) -> (i32, i32, i32, i32) {
    %c0_i32 = arith.constant 0 : i32
    %c0_i32_0 = arith.constant 0 : i32
    %c0_i32_1 = arith.constant 0 : i32
    %c0_i32_2 = arith.constant 0 : i32
    return %arg0, %c0_i32, %c0_i32_0, %c0_i32_1 : i32, i32, i32, i32
  }
  func.func @transform_1(%arg0: i32) -> (i32, i32, i32) {
    %c0_i32 = arith.constant 0 : i32
    %c0_i32_0 = arith.constant 0 : i32
    %c0_i32_1 = arith.constant 0 : i32
    %c0_i32_2 = arith.constant 0 : i32
    return %c0_i32, %c0_i32_0, %c0_i32_1 : i32, i32, i32
  }
  func.func @transform_2(%arg0: i32) -> (i32, i32) {
    %c0_i32 = arith.constant 0 : i32
    %c0_i32_0 = arith.constant 0 : i32
    %c0_i32_1 = arith.constant 0 : i32
    return %c0_i32, %c0_i32_0 : i32, i32
  }
  func.func @transform_3(%arg0: i32) -> (i32, i32, i32) {
    %c0_i32 = arith.constant 0 : i32
    %c0_i32_0 = arith.constant 0 : i32
    %c0_i32_1 = arith.constant 0 : i32
    return %arg0, %c0_i32, %c0_i32_0 : i32, i32, i32
  }
  func.func @transform_4(%arg0: i32) -> (i32, i32, i32) {
    %c0_i32 = arith.constant 0 : i32
    %c0_i32_0 = arith.constant 0 : i32
    %c0_i32_1 = arith.constant 0 : i32
    return %arg0, %c0_i32, %c0_i32_0 : i32, i32, i32
  }
  func.func @transform_5(%arg0: i32) -> (i32, i32, i32) {
    %c0_i32 = arith.constant 0 : i32
    %c0_i32_0 = arith.constant 0 : i32
    %c0_i32_1 = arith.constant 0 : i32
    return %arg0, %c0_i32, %c0_i32_0 : i32, i32, i32
  }
  func.func @transform_6(%arg0: i32) -> (i32, i32, i32, i32) {
    %c0_i32 = arith.constant 0 : i32
    %c0_i32_0 = arith.constant 0 : i32
    %c0_i32_1 = arith.constant 0 : i32
    %c0_i32_2 = arith.constant 0 : i32
    return %arg0, %c0_i32, %c0_i32_0, %c0_i32_1 : i32, i32, i32, i32
  }
}

</mosaic_0001>

<llo_original>
// kernel: tpu_custom_call.1
$region0: #{tpu_custom_call.1}
  #allocation0 [shape = 'u32[]', space=smem, size = 0x4, offset = 0x4, fixed_abs, tag = 'smem constant byte address 0x4 - core index']
  #allocation1 [shape = 'u32[144,128]{1,0:T(1,128)}', space=vmem, size = 0x12000, scoped, tag = 'internal scratch']
  %s0 = inlined_call_operand.vmem [shape: f32[8,9,9,3], index: 0, kind: input, shape index: {}]
  %s1 = inlined_call_operand.vmem [shape: bf16[9,3,16], index: 1, kind: input, shape index: {}]
  %s2 = inlined_call_operand.vmem [shape: f32[1,16], index: 2, kind: input, shape index: {}]
  %s3 = inlined_call_operand.vmem [shape: f32[2,1,16], index: 3, kind: input, shape index: {}]
  %s4 = inlined_call_operand.vmem [shape: f32[2,1,16], index: 4, kind: input, shape index: {}]
  %s5 = inlined_call_operand.vmem [shape: f32[2,1,16], index: 5, kind: input, shape index: {}]
  %s6 = inlined_call_operand.hbm [shape: f32[2,8,8,16], index: 6, kind: output, shape index: {}]
  %s7 = sld [smem:[#allocation0]]
  $region57: #{tpu_custom_call.1} parent=0
    _
  %s9 = ssub.s32 1, %s7
  %s10 = scalar_select 0, %s9, %s7
  $region1: #{tpu_custom_call.1} parent=0
    #allocation2 [shape = 'u8[65536]{0}', space=vmem, size = 0x10000, scoped, tag = 'output window, operand 0']
    #allocation3 [shape = 's32[2]{0}', space=sflag, size = 0x8, scoped, tag = 'scoped memory for tpu_custom_call.1']
    %11 = vsyncpa [#allocation3], 0
    %s12 = scalar_lea.sflag [#allocation3], 1
    %13 = vsyncpa %s12, 0
    loop: start=0, step=1, limit=4
    $region2: #{tpu_custom_call.1} parent=1 // loop_pre_header
      _
    $region3: #{tpu_custom_call.1} parent=1 // loop_header
      %s15 = sphi 0, %s19
      %p16 = scmp.ge.s32.totalorder %s15, 4
      %s25 = sphi 0, %s27
      %s28 = sphi 0, %s25
      %s29 = sphi 0, %s28
      %s45 = sphi 0, %s29
      %s49 = sphi 0, %s49
      %s51 = sphi 0, %s49
      %s52 = sphi 0, %s51
      %s66 = sphi 0, %s52
      %s70 = sphi 0, %s70
      %s72 = sphi 0, %s70
      %s73 = sphi 0, %s72
      %s87 = sphi 0, %s73
      %s93 = sphi 0, %s95
      %s96 = sphi 0, %s93
      %s97 = sphi 0, %s96
      %s113 = sphi 0, %s97
      %s119 = sphi 0, %s121
      %s122 = sphi 0, %s119
      %s123 = sphi 0, %s122
      %s139 = sphi 0, %s123
      %s145 = sphi 0, %s147
      %s148 = sphi 0, %s145
      %s149 = sphi 0, %s148
      %s165 = sphi 0, %s149
      %s171 = sphi 0, %s173
      %s174 = sphi 0, %s171
      %s175 = sphi 0, %s174
      %s191 = sphi 0, %s175
    $region4: #{tpu_custom_call.1} parent=1 // loop_header_branch
      %18 = sbr.rel (%p16) target = $region8
    $region5: #{tpu_custom_call.1} parent=1 // loop_body
      %s20 = ssub.s32 %s15, 1
      %s21 = ssub.s32 %s15, 2
      %s22 = sadd.s32 %s15, 1
      %s23 = ssub.s32 %s15, %s22
      %p24 = scmp.eq.s32.totalorder %s23, 0
      %s26 = sadd.s32 %s25, 1
      %s27 = scalar_select %p24, %s25, %s26
      %p30 = pneg %p24
      %p31 = scmp.eq.s32.totalorder %s15, 1
      %p32 = por %p30, %p31
      %p33 = scmp.ne.s32.totalorder %s25, %s28
      %p34 = scmp.eq.s32.totalorder %s15, 0
      %p35 = por %p33, %p34
      %p36 = scmp.ne.s32.totalorder %s25, %s28
      %p37 = scmp.eq.s32.totalorder %s20, 1
      %p38 = por %p36, %p37
      %p39 = scmp.ne.s32.totalorder %s28, %s29
      %p40 = scmp.eq.s32.totalorder %s20, 0
      %p41 = por %p39, %p40
      %p42 = scmp.ne.s32.totalorder %s28, %s29
      %p43 = scmp.eq.s32.totalorder %s21, 1
      %p44 = por %p42, %p43
      %p46 = scmp.ne.s32.totalorder %s29, %s45
      %p47 = scmp.eq.s32.totalorder %s21, 0
      %p48 = por %p46, %p47
      %s50 = sadd.s32 %s49, 1
      %p53 = scmp.eq.s32.totalorder %s15, 1
      %p54 = scmp.ne.s32.totalorder %s49, %s51
      %p55 = scmp.eq.s32.totalorder %s15, 0
      %p56 = por %p54, %p55
      %p57 = scmp.ne.s32.totalorder %s49, %s51
      %p58 = scmp.eq.s32.totalorder %s20, 1
      %p59 = por %p57, %p58
      %p60 = scmp.ne.s32.totalorder %s51, %s52
      %p61 = scmp.eq.s32.totalorder %s20, 0
      %p62 = por %p60, %p61
      %p63 = scmp.ne.s32.totalorder %s51, %s52
      %p64 = scmp.eq.s32.totalorder %s21, 1
      %p65 = por %p63, %p64
      %p67 = scmp.ne.s32.totalorder %s52, %s66
      %p68 = scmp.eq.s32.totalorder %s21, 0
      %p69 = por %p67, %p68
      %s71 = sadd.s32 %s70, 1
      %p74 = scmp.eq.s32.totalorder %s15, 1
      %p75 = scmp.ne.s32.totalorder %s70, %s72
      %p76 = scmp.eq.s32.totalorder %s15, 0
      %p77 = por %p75, %p76
      %p78 = scmp.ne.s32.totalorder %s70, %s72
      %p79 = scmp.eq.s32.totalorder %s20, 1
      %p80 = por %p78, %p79
      %p81 = scmp.ne.s32.totalorder %s72, %s73
      %p82 = scmp.eq.s32.totalorder %s20, 0
      %p83 = por %p81, %p82
      %p84 = scmp.ne.s32.totalorder %s72, %s73
      %p85 = scmp.eq.s32.totalorder %s21, 1
      %p86 = por %p84, %p85
      %p88 = scmp.ne.s32.totalorder %s73, %s87
      %p89 = scmp.eq.s32.totalorder %s21, 0
      %p90 = por %p88, %p89
      %s91 = ssub.s32 %s15, %s22
      %p92 = scmp.eq.s32.totalorder %s91, 0
      %s94 = sadd.s32 %s93, 1
      %s95 = scalar_select %p92, %s93, %s94
      %p98 = pneg %p92
      %p99 = scmp.eq.s32.totalorder %s15, 1
      %p100 = por %p98, %p99
      %p101 = scmp.ne.s32.totalorder %s93, %s96
      %p102 = scmp.eq.s32.totalorder %s15, 0
      %p103 = por %p101, %p102
      %p104 = scmp.ne.s32.totalorder %s93, %s96
      %p105 = scmp.eq.s32.totalorder %s20, 1
      %p106 = por %p104, %p105
      %p107 = scmp.ne.s32.totalorder %s96, %s97
      %p108 = scmp.eq.s32.totalorder %s20, 0
      %p109 = por %p107, %p108
      %p110 = scmp.ne.s32.totalorder %s96, %s97
      %p111 = scmp.eq.s32.totalorder %s21, 1
      %p112 = por %p110, %p111
      %p114 = scmp.ne.s32.totalorder %s97, %s113
      %p115 = scmp.eq.s32.totalorder %s21, 0
      %p116 = por %p114, %p115
      %s117 = ssub.s32 %s15, %s22
      %p118 = scmp.eq.s32.totalorder %s117, 0
      %s120 = sadd.s32 %s119, 1
      %s121 = scalar_select %p118, %s119, %s120
      %p124 = pneg %p118
      %p125 = scmp.eq.s32.totalorder %s15, 1
      %p126 = por %p124, %p125
      %p127 = scmp.ne.s32.totalorder %s119, %s122
      %p128 = scmp.eq.s32.totalorder %s15, 0
      %p129 = por %p127, %p128
      %p130 = scmp.ne.s32.totalorder %s119, %s122
      %p131 = scmp.eq.s32.totalorder %s20, 1
      %p132 = por %p130, %p131
      %p133 = scmp.ne.s32.totalorder %s122, %s123
      %p134 = scmp.eq.s32.totalorder %s20, 0
      %p135 = por %p133, %p134
      %p136 = scmp.ne.s32.totalorder %s122, %s123
      %p137 = scmp.eq.s32.totalorder %s21, 1
      %p138 = por %p136, %p137
      %p140 = scmp.ne.s32.totalorder %s123, %s139
      %p141 = scmp.eq.s32.totalorder %s21, 0
      %p142 = por %p140, %p141
      %s143 = ssub.s32 %s15, %s22
      %p144 = scmp.eq.s32.totalorder %s143, 0
      %s146 = sadd.s32 %s145, 1
      %s147 = scalar_select %p144, %s145, %s146
      %p150 = pneg %p144
      %p151 = scmp.eq.s32.totalorder %s15, 1
      %p152 = por %p150, %p151
      %p153 = scmp.ne.s32.totalorder %s145, %s148
      %p154 = scmp.eq.s32.totalorder %s15, 0
      %p155 = por %p153, %p154
      %p156 = scmp.ne.s32.totalorder %s145, %s148
      %p157 = scmp.eq.s32.totalorder %s20, 1
      %p158 = por %p156, %p157
      %p159 = scmp.ne.s32.totalorder %s148, %s149
      %p160 = scmp.eq.s32.totalorder %s20, 0
      %p161 = por %p159, %p160
      %p162 = scmp.ne.s32.totalorder %s148, %s149
      %p163 = scmp.eq.s32.totalorder %s21, 1
      %p164 = por %p162, %p163
      %p166 = scmp.ne.s32.totalorder %s149, %s165
      %p167 = scmp.eq.s32.totalorder %s21, 0
      %p168 = por %p166, %p167
      %s169 = ssub.s32 %s15, %s22
      %p170 = scmp.eq.s32.totalorder %s169, 0
      %s172 = sadd.s32 %s171, 1
      %s173 = scalar_select %p170, %s171, %s172
      %p176 = pneg %p170
      %p177 = scmp.eq.s32.totalorder %s15, 1
      %p178 = por %p176, %p177
      %p179 = scmp.ne.s32.totalorder %s171, %s174
      %p180 = scmp.eq.s32.totalorder %s15, 0
      %p181 = por %p179, %p180
      %p182 = scmp.ne.s32.totalorder %s171, %s174
      %p183 = scmp.eq.s32.totalorder %s20, 1
      %p184 = por %p182, %p183
      %p185 = scmp.ne.s32.totalorder %s174, %s175
      %p186 = scmp.eq.s32.totalorder %s20, 0
      %p187 = por %p185, %p186
      %p188 = scmp.ne.s32.totalorder %s174, %s175
      %p189 = scmp.eq.s32.totalorder %s21, 1
      %p190 = por %p188, %p189
      %p192 = scmp.ne.s32.totalorder %s175, %s191
      %p193 = scmp.eq.s32.totalorder %s21, 0
      %p194 = por %p192, %p193
      %p195 = scmp.le.s32.totalorder 1, %s15
      %p196 = scmp.lt.s32.totalorder %s15, 3
      %p197 = pnand %p195, %p196
      %p198 = pneg %p197
      // Predicated region
      $region9: #{tpu_custom_call.1} parent=5 // pred_check
        _
      $region10: #{tpu_custom_call.1} parent=5 // pred_check_branch
        %200 = sbr.rel (%p197) target = $region12
      $region11: #{tpu_custom_call.1} parent=5 // pred_region
        %s201 = ssub.s32 %s15, 1
        // Predicated region
        $region13: #{tpu_custom_call.1} parent=11 // pred_check
          %p202 = pneg %p62
        $region14: #{tpu_custom_call.1} parent=11 // pred_check_branch
          %204 = sbr.rel (%p202) target = $region16
        $region15: #{tpu_custom_call.1} parent=11 // pred_region
          _
        $region16: #{tpu_custom_call.1} parent=11 // pred_fallthru
          _
        // Predicated region
        $region17: #{tpu_custom_call.1} parent=11 // pred_check
          %p205 = pneg %p83
        $region18: #{tpu_custom_call.1} parent=11 // pred_check_branch
          %207 = sbr.rel (%p205) target = $region20
        $region19: #{tpu_custom_call.1} parent=11 // pred_region
          _
        $region20: #{tpu_custom_call.1} parent=11 // pred_fallthru
          _
      $region12: #{tpu_custom_call.1} parent=5 // pred_fallthru
        _
      %p208 = scmp.lt.s32.totalorder %s15, 2
      // Predicated region
      $region21: #{tpu_custom_call.1} parent=5 // pred_check
        %p209 = pneg %p208
      $region22: #{tpu_custom_call.1} parent=5 // pred_check_branch
        %211 = sbr.rel (%p209) target = $region24
      $region23: #{tpu_custom_call.1} parent=5 // pred_region
        // Predicated region
        $region25: #{tpu_custom_call.1} parent=23 // pred_check
          %p212 = pneg %p35
        $region26: #{tpu_custom_call.1} parent=23 // pred_check_branch
          %214 = sbr.rel (%p212) target = $region28
        $region27: #{tpu_custom_call.1} parent=23 // pred_region
          %s215 = smul.u32 4, %s15
          %p216 = scmp.lt.s32.totalorder %s215, 7
          %s217 = scalar_select %p216, %s215, 7
          %s218 = smul.addr %s217, 18
          %s219 = smul.addr %s218, 8
          %s220 = scalar_lea.vmem %s0, %s219
          %s221 = smul.u32 4, %s15
        $region28: #{tpu_custom_call.1} parent=23 // pred_fallthru
          _
        // Predicated region
        $region29: #{tpu_custom_call.1} parent=23 // pred_check
          %p222 = pneg %p103
        $region30: #{tpu_custom_call.1} parent=23 // pred_check_branch
          %224 = sbr.rel (%p222) target = $region32
        $region31: #{tpu_custom_call.1} parent=23 // pred_region
          %p225 = scmp.lt.s32.totalorder %s15, 1
          %s226 = scalar_select %p225, %s15, 1
          %s227 = scalar_lea.vmem %s3, %s226
        $region32: #{tpu_custom_call.1} parent=23 // pred_fallthru
          _
        // Predicated region
        $region33: #{tpu_custom_call.1} parent=23 // pred_check
          %p228 = pneg %p129
        $region34: #{tpu_custom_call.1} parent=23 // pred_check_branch
          %230 = sbr.rel (%p228) target = $region36
        $region35: #{tpu_custom_call.1} parent=23 // pred_region
          %p231 = scmp.lt.s32.totalorder %s15, 1
          %s232 = scalar_select %p231, %s15, 1
          %s233 = scalar_lea.vmem %s4, %s232
        $region36: #{tpu_custom_call.1} parent=23 // pred_fallthru
          _
        // Predicated region
        $region37: #{tpu_custom_call.1} parent=23 // pred_check
          %p234 = pneg %p155
        $region38: #{tpu_custom_call.1} parent=23 // pred_check_branch
          %236 = sbr.rel (%p234) target = $region40
        $region39: #{tpu_custom_call.1} parent=23 // pred_region
          %p237 = scmp.lt.s32.totalorder %s15, 1
          %s238 = scalar_select %p237, %s15, 1
          %s239 = scalar_lea.vmem %s5, %s238
        $region40: #{tpu_custom_call.1} parent=23 // pred_fallthru
          _
      $region24: #{tpu_custom_call.1} parent=5 // pred_fallthru
        _
      %p240 = scmp.le.s32.totalorder 1, %s15
      %p241 = scmp.lt.s32.totalorder %s15, 3
      %p242 = pnand %p240, %p241
      %p243 = pneg %p242
      // Predicated region
      $region41: #{tpu_custom_call.1} parent=5 // pred_check
        _
      $region42: #{tpu_custom_call.1} parent=5 // pred_check_branch
        %245 = sbr.rel (%p242) target = $region44
      $region43: #{tpu_custom_call.1} parent=5 // pred_region
        %s246 = ssub.s32 %s15, 1
        %s247 = smul.u32 4, %s20
        %p248 = scmp.lt.s32.totalorder %s247, 7
        %s249 = scalar_select %p248, %s247, 7
        %s250 = smul.addr %s249, 18
        %s251 = smul.addr %s250, 8
        %s252 = scalar_lea.vmem %s0, %s251
        %p253 = pneg %p41
        %p254 = pneg %p38
        %p255 = pneg %p62
        %p256 = pneg %p59
        %p257 = pneg %p83
        %p258 = pneg %p80
        %p259 = scmp.lt.s32.totalorder %s20, 1
        %s260 = scalar_select %p259, %s20, 1
        %s261 = scalar_lea.vmem %s3, %s260
        %p262 = pneg %p109
        %p263 = pneg %p106
        %p264 = scmp.lt.s32.totalorder %s20, 1
        %s265 = scalar_select %p264, %s20, 1
        %s266 = scalar_lea.vmem %s4, %s265
        %p267 = pneg %p135
        %p268 = pneg %p132
        %p269 = scmp.lt.s32.totalorder %s20, 1
        %s270 = scalar_select %p269, %s20, 1
        %s271 = scalar_lea.vmem %s5, %s270
        %p272 = pneg %p161
        %p273 = pneg %p158
        %p274 = pneg %p187
        %p275 = pneg %p184
        %s276 = sand.u32 %s174, 1
        %s277 = scalar_lea.sflag [#allocation3], %s276
        %s278 = sand.u32 %s174, 1
        %s279 = smul.addr %s278, 64
        %s280 = scalar_lea.vmem [#allocation2], %s279
        %s281 = smul.u32 4, %s20
        %p282 = scmp.lt.s32.totalorder %s281, 7
        %s283 = scalar_select %p282, %s281, 7
        %s284 = smul.addr %s283, 18
        %s285 = smul.addr %s284, 8
        %s286 = scalar_lea.vmem %s0, %s285
        %s287 = smul.u32 4, %s20
        %p288 = scmp.lt.s32.totalorder %s20, 1
        %s289 = scalar_select %p288, %s20, 1
        %s290 = scalar_lea.vmem %s3, %s289
        %p291 = scmp.lt.s32.totalorder %s20, 1
        %s292 = scalar_select %p291, %s20, 1
        %s293 = scalar_lea.vmem %s4, %s292
        %p294 = scmp.lt.s32.totalorder %s20, 1
        %s295 = scalar_select %p294, %s20, 1
        %s296 = scalar_lea.vmem %s5, %s295
        %v298 = vld [vmem:[%s286] sm:$0xff]
        %v299 = vld [vmem:[%s286 + $0x10] sm:$0xff]
        %v300 = vld [vmem:[%s286 + $0x20] sm:$0xff]
        %v301 = vld [vmem:[%s286 + $0x30] sm:$0xff]
        %v302 = vld [vmem:[%s286 + $0x40] sm:$0xff]
        %v303 = vld [vmem:[%s286 + $0x50] sm:$0xff]
        %v304 = vld [vmem:[%s286 + $0x60] sm:$0xff]
        %v305 = vld [vmem:[%s286 + $0x70] sm:$0xff]
        %v306 = vpack.c.bf16 %v299, %v298
        %v307 = vpack.c.bf16 %v301, %v300
        %v308 = vpack.c.bf16 %v303, %v302
        %v309 = vpack.c.bf16 %v305, %v304
        %v310 = vld [vmem:[%s1] sm:$0x3]
        %s311 = scalar_lea.vmem %s286, 144
        %v312 = vld [vmem:[%s311] sm:$0xff]
        %v313 = vld [vmem:[%s311 + $0x10] sm:$0xff]
        %v314 = vld [vmem:[%s311 + $0x20] sm:$0xff]
        %v315 = vld [vmem:[%s311 + $0x30] sm:$0xff]
        %v316 = vld [vmem:[%s311 + $0x40] sm:$0xff]
        %v317 = vld [vmem:[%s311 + $0x50] sm:$0xff]
        %v318 = vld [vmem:[%s311 + $0x60] sm:$0xff]
        %v319 = vld [vmem:[%s311 + $0x70] sm:$0xff]
        %v320 = vpack.c.bf16 %v313, %v312
        %v321 = vpack.c.bf16 %v315, %v314
        %v322 = vpack.c.bf16 %v317, %v316
        %v323 = vpack.c.bf16 %v319, %v318
        %s324 = scalar_lea.vmem %s1, 2
        %v325 = vld [vmem:[%s324] sm:$0x3]
        %vm326 = vcmask 23552
        %v328 = vsel %vm326, %v320, 0
        %v331 = vsel %vm326, %v321, 0
        %v334 = vsel %vm326, %v322, 0
        %v337 = vsel %vm326, %v323, 0
        %vm339 = vcmask 1040384
        %vm340 = vcmask 1041408
        %v341 = vsel %vm339, 4294967295, 65535
        %v342 = vsel %vm340, %v341, 0
        %v344 = vand.u32 %v325, %v342
        %346 = vmatprep.subr.bf16.mxu0 0
        %347 = vmatpush1.bf16.msra.mxu0 %v344
        %348 = vmatprep.subr.bf16.mxu0 0
        %349 = vmatpush1.bf16.msra.mxu0 0
        %350 = vmatprep.subr.bf16.mxu0 0
        %351 = vmatpush1.bf16.msra.mxu0 0
        %352 = vmatprep.subr.bf16.mxu0 0
        %353 = vmatpush1.bf16.msra.mxu0 0
        %354 = vmatprep.subr.bf16.mxu0 0
        %355 = vmatpush1.bf16.msra.mxu0 0
        %356 = vmatprep.subr.bf16.mxu0 0
        %357 = vmatpush1.bf16.msra.mxu0 0
        %358 = vmatprep.subr.bf16.mxu0 0
        %359 = vmatpush1.bf16.msra.mxu0 0
        %360 = vmatprep.subr.bf16.mxu0 0
        %361 = vmatpush1.bf16.msra.mxu0 0
        %362 = vmatprep.subr.bf16.mxu0 0
        %363 = vmatpush1.bf16.msra.mxu0 0
        %364 = vmatprep.subr.bf16.mxu0 0
        %365 = vmatpush1.bf16.msra.mxu0 0
        %366 = vmatprep.subr.bf16.mxu0 0
        %367 = vmatpush1.bf16.msra.mxu0 0
        %368 = vmatprep.subr.bf16.mxu0 0
        %369 = vmatpush1.bf16.msra.mxu0 0
        %370 = vmatprep.subr.bf16.mxu0 0
        %371 = vmatpush1.bf16.msra.mxu0 0
        %372 = vmatprep.subr.bf16.mxu0 0
        %373 = vmatpush1.bf16.msra.mxu0 0
        %374 = vmatprep.subr.bf16.mxu0 0
        %375 = vmatpush1.bf16.msra.mxu0 0
        %376 = vmatprep.subr.bf16.mxu0 0
        %377 = vmatpush1.bf16.msra.mxu0 0
        %378 = vmatprep.mubr.bf16.mxu0 0
        %379 = vmatmul.mubr.bf16.gmra.mrb[0].mxu0 %v328
        %v380 = vpop.f32.mrb[0].mxu0
        %v381 = vadd.f32 0.0, %v380
        %v382 = vpop.f32.mrb[0].mxu0
        %v383 = vpop.f32.mrb[0].mxu0
        %v384 = vadd.f32 0.0, %v383
        %v385 = vpop.f32.mrb[0].mxu0
        %386 = vmatprep.mubr.bf16.mxu0 0
        %387 = vmatmul.mubr.bf16.gmra.mrb[0].mxu0 %v331
        %v388 = vpop.f32.mrb[0].mxu0
        %v389 = vadd.f32 0.0, %v388
        %v390 = vpop.f32.mrb[0].mxu0
        %v391 = vpop.f32.mrb[0].mxu0
        %v392 = vadd.f32 0.0, %v391
        %v393 = vpop.f32.mrb[0].mxu0
        %394 = vmatprep.mubr.bf16.mxu0 0
        %395 = vmatmul.mubr.bf16.gmra.mrb[0].mxu0 %v334
        %v396 = vpop.f32.mrb[0].mxu0
        %v397 = vadd.f32 0.0, %v396
        %v398 = vpop.f32.mrb[0].mxu0
        %v399 = vpop.f32.mrb[0].mxu0
        %v400 = vadd.f32 0.0, %v399
        %v401 = vpop.f32.mrb[0].mxu0
        %402 = vmatprep.mubr.bf16.mxu0 0
        %403 = vmatmul.mubr.bf16.gmra.mrb[0].mxu0 %v337
        %v404 = vpop.f32.mrb[0].mxu0
        %v405 = vadd.f32 0.0, %v404
        %v406 = vpop.f32.mrb[0].mxu0
        %v407 = vpop.f32.mrb[0].mxu0
        %v408 = vadd.f32 0.0, %v407
        %v409 = vpop.f32.mrb[0].mxu0
        %410 = vdwg.mxu0
        %v412 = vsel %vm326, %v306, 0
        %v415 = vsel %vm326, %v307, 0
        %v418 = vsel %vm326, %v308, 0
        %v421 = vsel %vm326, %v309, 0
        %v424 = vand.u32 %v310, %v342
        %426 = vmatprep.subr.bf16.mxu0 0
        %427 = vmatpush1.bf16.msra.mxu0 %v424
        %428 = vmatprep.subr.bf16.mxu0 0
        %429 = vmatpush1.bf16.msra.mxu0 0
        %430 = vmatprep.subr.bf16.mxu0 0
        %431 = vmatpush1.bf16.msra.mxu0 0
        %432 = vmatprep.subr.bf16.mxu0 0
        %433 = vmatpush1.bf16.msra.mxu0 0
        %434 = vmatprep.subr.bf16.mxu0 0
        %435 = vmatpush1.bf16.msra.mxu0 0
        %436 = vmatprep.subr.bf16.mxu0 0
        %437 = vmatpush1.bf16.msra.mxu0 0
        %438 = vmatprep.subr.bf16.mxu0 0
        %439 = vmatpush1.bf16.msra.mxu0 0
        %440 = vmatprep.subr.bf16.mxu0 0
        %441 = vmatpush1.bf16.msra.mxu0 0
        %442 = vmatprep.subr.bf16.mxu0 0
        %443 = vmatpush1.bf16.msra.mxu0 0
        %444 = vmatprep.subr.bf16.mxu0 0
        %445 = vmatpush1.bf16.msra.mxu0 0
        %446 = vmatprep.subr.bf16.mxu0 0
        %447 = vmatpush1.bf16.msra.mxu0 0
        %448 = vmatprep.subr.bf16.mxu0 0
        %449 = vmatpush1.bf16.msra.mxu0 0
        %450 = vmatprep.subr.bf16.mxu0 0
        %451 = vmatpush1.bf16.msra.mxu0 0
        %452 = vmatprep.subr.bf16.mxu0 0
        %453 = vmatpush1.bf16.msra.mxu0 0
        %454 = vmatprep.subr.bf16.mxu0 0
        %455 = vmatpush1.bf16.msra.mxu0 0
        %456 = vmatprep.subr.bf16.mxu0 0
        %457 = vmatpush1.bf16.msra.mxu0 0
        %458 = vmatprep.mubr.bf16.mxu0 0
        %459 = vmatmul.mubr.bf16.gmra.mrb[0].mxu0 %v412
        %v460 = vpop.f32.mrb[0].mxu0
        %v461 = vadd.f32 %v381, %v460
        %v462 = vpop.f32.mrb[0].mxu0
        %v463 = vpop.f32.mrb[0].mxu0
        %v464 = vadd.f32 %v384, %v463
        %v465 = vpop.f32.mrb[0].mxu0
        %466 = vmatprep.mubr.bf16.mxu0 0
        %467 = vmatmul.mubr.bf16.gmra.mrb[0].mxu0 %v415
        %v468 = vpop.f32.mrb[0].mxu0
        %v469 = vadd.f32 %v389, %v468
        %v470 = vpop.f32.mrb[0].mxu0
        %v471 = vpop.f32.mrb[0].mxu0
        %v472 = vadd.f32 %v392, %v471
        %v473 = vpop.f32.mrb[0].mxu0
        %474 = vmatprep.mubr.bf16.mxu0 0
        %475 = vmatmul.mubr.bf16.gmra.mrb[0].mxu0 %v418
        %v476 = vpop.f32.mrb[0].mxu0
        %v477 = vadd.f32 %v397, %v476
        %v478 = vpop.f32.mrb[0].mxu0
        %v479 = vpop.f32.mrb[0].mxu0
        %v480 = vadd.f32 %v400, %v479
        %v481 = vpop.f32.mrb[0].mxu0
        %482 = vmatprep.mubr.bf16.mxu0 0
        %483 = vmatmul.mubr.bf16.gmra.mrb[0].mxu0 %v421
        %v484 = vpop.f32.mrb[0].mxu0
        %v485 = vadd.f32 %v405, %v484
        %v486 = vpop.f32.mrb[0].mxu0
        %v487 = vpop.f32.mrb[0].mxu0
        %v488 = vadd.f32 %v408, %v487
        %v489 = vpop.f32.mrb[0].mxu0
        %490 = vdwg.mxu0
        %v491 = vld [vmem:[%s286 + $0x1] sm:$0xff]
        %v492 = vld [vmem:[%s286 + $0x11] sm:$0xff]
        %v493 = vld [vmem:[%s286 + $0x21] sm:$0xff]
        %v494 = vld [vmem:[%s286 + $0x31] sm:$0xff]
        %v495 = vld [vmem:[%s286 + $0x41] sm:$0xff]
        %v496 = vld [vmem:[%s286 + $0x51] sm:$0xff]
        %v497 = vld [vmem:[%s286 + $0x61] sm:$0xff]
        %v498 = vld [vmem:[%s286 + $0x71] sm:$0xff]
        %v499 = vpack.c.bf16 %v492, %v491
        %v500 = vpack.c.bf16 %v494, %v493
        %v501 = vpack.c.bf16 %v496, %v495
        %v502 = vpack.c.bf16 %v498, %v497
        %s503 = scalar_lea.vmem %s1, 4
        %v504 = vld [vmem:[%s503] sm:$0x3]
        %v506 = vsel %vm326, %v499, 0
        %v509 = vsel %vm326, %v500, 0
        %v512 = vsel %vm326, %v501, 0
        %v515 = vsel %vm326, %v502, 0
        %v518 = vand.u32 %v504, %v342
        %520 = vmatprep.subr.bf16.mxu0 0
        %521 = vmatpush1.bf16.msra.mxu0 %v518
        %522 = vmatprep.subr.bf16.mxu0 0
        %523 = vmatpush1.bf16.msra.mxu0 0
        %524 = vmatprep.subr.bf16.mxu0 0
        %525 = vmatpush1.bf16.msra.mxu0 0
        %526 = vmatprep.subr.bf16.mxu0 0
        %527 = vmatpush1.bf16.msra.mxu0 0
        %528 = vmatprep.subr.bf16.mxu0 0
        %529 = vmatpush1.bf16.msra.mxu0 0
        %530 = vmatprep.subr.bf16.mxu0 0
        %531 = vmatpush1.bf16.msra.mxu0 0
        %532 = vmatprep.subr.bf16.mxu0 0
        %533 = vmatpush1.bf16.msra.mxu0 0
        %534 = vmatprep.subr.bf16.mxu0 0
        %535 = vmatpush1.bf16.msra.mxu0 0
        %536 = vmatprep.subr.bf16.mxu0 0
        %537 = vmatpush1.bf16.msra.mxu0 0
        %538 = vmatprep.subr.bf16.mxu0 0
        %539 = vmatpush1.bf16.msra.mxu0 0
        %540 = vmatprep.subr.bf16.mxu0 0
        %541 = vmatpush1.bf16.msra.mxu0 0
        %542 = vmatprep.subr.bf16.mxu0 0
        %543 = vmatpush1.bf16.msra.mxu0 0
        %544 = vmatprep.subr.bf16.mxu0 0
        %545 = vmatpush1.bf16.msra.mxu0 0
        %546 = vmatprep.subr.bf16.mxu0 0
        %547 = vmatpush1.bf16.msra.mxu0 0
        %548 = vmatprep.subr.bf16.mxu0 0
        %549 = vmatpush1.bf16.msra.mxu0 0
        %550 = vmatprep.subr.bf16.mxu0 0
        %551 = vmatpush1.bf16.msra.mxu0 0
        %552 = vmatprep.mubr.bf16.mxu0 0
        %553 = vmatmul.mubr.bf16.gmra.mrb[0].mxu0 %v506
        %v554 = vpop.f32.mrb[0].mxu0
        %v555 = vadd.f32 0.0, %v554
        %v556 = vpop.f32.mrb[0].mxu0
        %v557 = vpop.f32.mrb[0].mxu0
        %v558 = vadd.f32 0.0, %v557
        %v559 = vpop.f32.mrb[0].mxu0
        %560 = vmatprep.mubr.bf16.mxu0 0
        %561 = vmatmul.mubr.bf16.gmra.mrb[0].mxu0 %v509
        %v562 = vpop.f32.mrb[0].mxu0
        %v563 = vadd.f32 0.0, %v562
        %v564 = vpop.f32.mrb[0].mxu0
        %v565 = vpop.f32.mrb[0].mxu0
        %v566 = vadd.f32 0.0, %v565
        %v567 = vpop.f32.mrb[0].mxu0
        %568 = vmatprep.mubr.bf16.mxu0 0
        %569 = vmatmul.mubr.bf16.gmra.mrb[0].mxu0 %v512
        %v570 = vpop.f32.mrb[0].mxu0
        %v571 = vadd.f32 0.0, %v570
        %v572 = vpop.f32.mrb[0].mxu0
        %v573 = vpop.f32.mrb[0].mxu0
        %v574 = vadd.f32 0.0, %v573
        %v575 = vpop.f32.mrb[0].mxu0
        %576 = vmatprep.mubr.bf16.mxu0 0
        %577 = vmatmul.mubr.bf16.gmra.mrb[0].mxu0 %v515
        %v578 = vpop.f32.mrb[0].mxu0
        %v579 = vadd.f32 0.0, %v578
        %v580 = vpop.f32.mrb[0].mxu0
        %v581 = vpop.f32.mrb[0].mxu0
        %v582 = vadd.f32 0.0, %v581
        %v583 = vpop.f32.mrb[0].mxu0
        %584 = vdwg.mxu0
        %v585 = vadd.f32 %v461, %v555
        %v586 = vadd.f32 %v464, %v558
        %v587 = vadd.f32 %v469, %v563
        %v588 = vadd.f32 %v472, %v566
        %v589 = vadd.f32 %v477, %v571
        %v590 = vadd.f32 %v480, %v574
        %v591 = vadd.f32 %v485, %v579
        %v592 = vadd.f32 %v488, %v582
        %s593 = scalar_lea.vmem %s286, 288
        %v594 = vld [vmem:[%s593] sm:$0xff]
        %v595 = vld [vmem:[%s593 + $0x10] sm:$0xff]
        %v596 = vld [vmem:[%s593 + $0x20] sm:$0xff]
        %v597 = vld [vmem:[%s593 + $0x30] sm:$0xff]
        %v598 = vld [vmem:[%s593 + $0x40] sm:$0xff]
        %v599 = vld [vmem:[%s593 + $0x50] sm:$0xff]
        %v600 = vld [vmem:[%s593 + $0x60] sm:$0xff]
        %v601 = vld [vmem:[%s593 + $0x70] sm:$0xff]
        %v602 = vpack.c.bf16 %v595, %v594
        %v603 = vpack.c.bf16 %v597, %v596
        %v604 = vpack.c.bf16 %v599, %v598
        %v605 = vpack.c.bf16 %v601, %v600
        %s606 = scalar_lea.vmem %s1, 6
        %v607 = vld [vmem:[%s606] sm:$0x3]
        %v609 = vsel %vm326, %v602, 0
        %v612 = vsel %vm326, %v603, 0
        %v615 = vsel %vm326, %v604, 0
        %v618 = vsel %vm326, %v605, 0
        %v621 = vand.u32 %v607, %v342
        %623 = vmatprep.subr.bf16.mxu0 0
        %624 = vmatpush1.bf16.msra.mxu0 %v621
        %625 = vmatprep.subr.bf16.mxu0 0
        %626 = vmatpush1.bf16.msra.mxu0 0
        %627 = vmatprep.subr.bf16.mxu0 0
        %628 = vmatpush1.bf16.msra.mxu0 0
        %629 = vmatprep.subr.bf16.mxu0 0
        %630 = vmatpush1.bf16.msra.mxu0 0
        %631 = vmatprep.subr.bf16.mxu0 0
        %632 = vmatpush1.bf16.msra.mxu0 0
        %633 = vmatprep.subr.bf16.mxu0 0
        %634 = vmatpush1.bf16.msra.mxu0 0
        %635 = vmatprep.subr.bf16.mxu0 0
        %636 = vmatpush1.bf16.msra.mxu0 0
        %637 = vmatprep.subr.bf16.mxu0 0
        %638 = vmatpush1.bf16.msra.mxu0 0
        %639 = vmatprep.subr.bf16.mxu0 0
        %640 = vmatpush1.bf16.msra.mxu0 0
        %641 = vmatprep.subr.bf16.mxu0 0
        %642 = vmatpush1.bf16.msra.mxu0 0
        %643 = vmatprep.subr.bf16.mxu0 0
        %644 = vmatpush1.bf16.msra.mxu0 0
        %645 = vmatprep.subr.bf16.mxu0 0
        %646 = vmatpush1.bf16.msra.mxu0 0
        %647 = vmatprep.subr.bf16.mxu0 0
        %648 = vmatpush1.bf16.msra.mxu0 0
        %649 = vmatprep.subr.bf16.mxu0 0
        %650 = vmatpush1.bf16.msra.mxu0 0
        %651 = vmatprep.subr.bf16.mxu0 0
        %652 = vmatpush1.bf16.msra.mxu0 0
        %653 = vmatprep.subr.bf16.mxu0 0
        %654 = vmatpush1.bf16.msra.mxu0 0
        %655 = vmatprep.mubr.bf16.mxu0 0
        %656 = vmatmul.mubr.bf16.gmra.mrb[0].mxu0 %v609
        %v657 = vpop.f32.mrb[0].mxu0
        %v658 = vadd.f32 0.0, %v657
        %v659 = vpop.f32.mrb[0].mxu0
        %v660 = vpop.f32.mrb[0].mxu0
        %v661 = vadd.f32 0.0, %v660
        %v662 = vpop.f32.mrb[0].mxu0
        %663 = vmatprep.mubr.bf16.mxu0 0
        %664 = vmatmul.mubr.bf16.gmra.mrb[0].mxu0 %v612
        %v665 = vpop.f32.mrb[0].mxu0
        %v666 = vadd.f32 0.0, %v665
        %v667 = vpop.f32.mrb[0].mxu0
        %v668 = vpop.f32.mrb[0].mxu0
        %v669 = vadd.f32 0.0, %v668
        %v670 = vpop.f32.mrb[0].mxu0
        %671 = vmatprep.mubr.bf16.mxu0 0
        %672 = vmatmul.mubr.bf16.gmra.mrb[0].mxu0 %v615
        %v673 = vpop.f32.mrb[0].mxu0
        %v674 = vadd.f32 0.0, %v673
        %v675 = vpop.f32.mrb[0].mxu0
        %v676 = vpop.f32.mrb[0].mxu0
        %v677 = vadd.f32 0.0, %v676
        %v678 = vpop.f32.mrb[0].mxu0
        %679 = vmatprep.mubr.bf16.mxu0 0
        %680 = vmatmul.mubr.bf16.gmra.mrb[0].mxu0 %v618
        %v681 = vpop.f32.mrb[0].mxu0
        %v682 = vadd.f32 0.0, %v681
        %v683 = vpop.f32.mrb[0].mxu0
        %v684 = vpop.f32.mrb[0].mxu0
        %v685 = vadd.f32 0.0, %v684
        %v686 = vpop.f32.mrb[0].mxu0
        %687 = vdwg.mxu0
        %v688 = vadd.f32 %v585, %v658
        %v689 = vadd.f32 %v586, %v661
        %v690 = vadd.f32 %v587, %v666
        %v691 = vadd.f32 %v588, %v669
        %v692 = vadd.f32 %v589, %v674
        %v693 = vadd.f32 %v590, %v677
        %v694 = vadd.f32 %v591, %v682
        %v695 = vadd.f32 %v592, %v685
        %s696 = scalar_lea.vmem %s286, 432
        %v697 = vld [vmem:[%s696] sm:$0xff]
        %v698 = vld [vmem:[%s696 + $0x10] sm:$0xff]
        %v699 = vld [vmem:[%s696 + $0x20] sm:$0xff]
        %v700 = vld [vmem:[%s696 + $0x30] sm:$0xff]
        %v701 = vld [vmem:[%s696 + $0x40] sm:$0xff]
        %v702 = vld [vmem:[%s696 + $0x50] sm:$0xff]
        %v703 = vld [vmem:[%s696 + $0x60] sm:$0xff]
        %v704 = vld [vmem:[%s696 + $0x70] sm:$0xff]
        %v705 = vpack.c.bf16 %v698, %v697
        %v706 = vpack.c.bf16 %v700, %v699
        %v707 = vpack.c.bf16 %v702, %v701
        %v708 = vpack.c.bf16 %v704, %v703
        %s709 = scalar_lea.vmem %s1, 8
        %v710 = vld [vmem:[%s709] sm:$0x3]
        %v712 = vsel %vm326, %v705, 0
        %v715 = vsel %vm326, %v706, 0
        %v718 = vsel %vm326, %v707, 0
        %v721 = vsel %vm326, %v708, 0
        %v724 = vand.u32 %v710, %v342
        %726 = vmatprep.subr.bf16.mxu0 0
        %727 = vmatpush1.bf16.msra.mxu0 %v724
        %728 = vmatprep.subr.bf16.mxu0 0
        %729 = vmatpush1.bf16.msra.mxu0 0
        %730 = vmatprep.subr.bf16.mxu0 0
        %731 = vmatpush1.bf16.msra.mxu0 0
        %732 = vmatprep.subr.bf16.mxu0 0
        %733 = vmatpush1.bf16.msra.mxu0 0
        %734 = vmatprep.subr.bf16.mxu0 0
        %735 = vmatpush1.bf16.msra.mxu0 0
        %736 = vmatprep.subr.bf16.mxu0 0
        %737 = vmatpush1.bf16.msra.mxu0 0
        %738 = vmatprep.subr.bf16.mxu0 0
        %739 = vmatpush1.bf16.msra.mxu0 0
        %740 = vmatprep.subr.bf16.mxu0 0
        %741 = vmatpush1.bf16.msra.mxu0 0
        %742 = vmatprep.subr.bf16.mxu0 0
        %743 = vmatpush1.bf16.msra.mxu0 0
        %744 = vmatprep.subr.bf16.mxu0 0
        %745 = vmatpush1.bf16.msra.mxu0 0
        %746 = vmatprep.subr.bf16.mxu0 0
        %747 = vmatpush1.bf16.msra.mxu0 0
        %748 = vmatprep.subr.bf16.mxu0 0
        %749 = vmatpush1.bf16.msra.mxu0 0
        %750 = vmatprep.subr.bf16.mxu0 0
        %751 = vmatpush1.bf16.msra.mxu0 0
        %752 = vmatprep.subr.bf16.mxu0 0
        %753 = vmatpush1.bf16.msra.mxu0 0
        %754 = vmatprep.subr.bf16.mxu0 0
        %755 = vmatpush1.bf16.msra.mxu0 0
        %756 = vmatprep.subr.bf16.mxu0 0
        %757 = vmatpush1.bf16.msra.mxu0 0
        %758 = vmatprep.mubr.bf16.mxu0 0
        %759 = vmatmul.mubr.bf16.gmra.mrb[0].mxu0 %v712
        %v760 = vpop.f32.mrb[0].mxu0
        %v761 = vadd.f32 0.0, %v760
        %v762 = vpop.f32.mrb[0].mxu0
        %v763 = vpop.f32.mrb[0].mxu0
        %v764 = vadd.f32 0.0, %v763
        %v765 = vpop.f32.mrb[0].mxu0
        %766 = vmatprep.mubr.bf16.mxu0 0
        %767 = vmatmul.mubr.bf16.gmra.mrb[0].mxu0 %v715
        %v768 = vpop.f32.mrb[0].mxu0
        %v769 = vadd.f32 0.0, %v768
        %v770 = vpop.f32.mrb[0].mxu0
        %v771 = vpop.f32.mrb[0].mxu0
        %v772 = vadd.f32 0.0, %v771
        %v773 = vpop.f32.mrb[0].mxu0
        %774 = vmatprep.mubr.bf16.mxu0 0
        %775 = vmatmul.mubr.bf16.gmra.mrb[0].mxu0 %v718
        %v776 = vpop.f32.mrb[0].mxu0
        %v777 = vadd.f32 0.0, %v776
        %v778 = vpop.f32.mrb[0].mxu0
        %v779 = vpop.f32.mrb[0].mxu0
        %v780 = vadd.f32 0.0, %v779
        %v781 = vpop.f32.mrb[0].mxu0
        %782 = vmatprep.mubr.bf16.mxu0 0
        %783 = vmatmul.mubr.bf16.gmra.mrb[0].mxu0 %v721
        %v784 = vpop.f32.mrb[0].mxu0
        %v785 = vadd.f32 0.0, %v784
        %v786 = vpop.f32.mrb[0].mxu0
        %v787 = vpop.f32.mrb[0].mxu0
        %v788 = vadd.f32 0.0, %v787
        %v789 = vpop.f32.mrb[0].mxu0
        %790 = vdwg.mxu0
        %v791 = vadd.f32 %v688, %v761
        %v792 = vadd.f32 %v689, %v764
        %v793 = vadd.f32 %v690, %v769
        %v794 = vadd.f32 %v691, %v772
        %v795 = vadd.f32 %v692, %v777
        %v796 = vadd.f32 %v693, %v780
        %v797 = vadd.f32 %v694, %v785
        %v798 = vadd.f32 %v695, %v788
        %v799 = vld [vmem:[%s593 + $0x1] sm:$0xff]
        %v800 = vld [vmem:[%s593 + $0x11] sm:$0xff]
        %v801 = vld [vmem:[%s593 + $0x21] sm:$0xff]
        %v802 = vld [vmem:[%s593 + $0x31] sm:$0xff]
        %v803 = vld [vmem:[%s593 + $0x41] sm:$0xff]
        %v804 = vld [vmem:[%s593 + $0x51] sm:$0xff]
        %v805 = vld [vmem:[%s593 + $0x61] sm:$0xff]
        %v806 = vld [vmem:[%s593 + $0x71] sm:$0xff]
        %v807 = vpack.c.bf16 %v800, %v799
        %v808 = vpack.c.bf16 %v802, %v801
        %v809 = vpack.c.bf16 %v804, %v803
        %v810 = vpack.c.bf16 %v806, %v805
        %s811 = scalar_lea.vmem %s1, 10
        %v812 = vld [vmem:[%s811] sm:$0x3]
        %v814 = vsel %vm326, %v807, 0
        %v817 = vsel %vm326, %v808, 0
        %v820 = vsel %vm326, %v809, 0
        %v823 = vsel %vm326, %v810, 0
        %v826 = vand.u32 %v812, %v342
        %828 = vmatprep.subr.bf16.mxu0 0
        %829 = vmatpush1.bf16.msra.mxu0 %v826
        %830 = vmatprep.subr.bf16.mxu0 0
        %831 = vmatpush1.bf16.msra.mxu0 0
        %832 = vmatprep.subr.bf16.mxu0 0
        %833 = vmatpush1.bf16.msra.mxu0 0
        %834 = vmatprep.subr.bf16.mxu0 0
        %835 = vmatpush1.bf16.msra.mxu0 0
        %836 = vmatprep.subr.bf16.mxu0 0
        %837 = vmatpush1.bf16.msra.mxu0 0
        %838 = vmatprep.subr.bf16.mxu0 0
        %839 = vmatpush1.bf16.msra.mxu0 0
        %840 = vmatprep.subr.bf16.mxu0 0
        %841 = vmatpush1.bf16.msra.mxu0 0
        %842 = vmatprep.subr.bf16.mxu0 0
        %843 = vmatpush1.bf16.msra.mxu0 0
        %844 = vmatprep.subr.bf16.mxu0 0
        %845 = vmatpush1.bf16.msra.mxu0 0
        %846 = vmatprep.subr.bf16.mxu0 0
        %847 = vmatpush1.bf16.msra.mxu0 0
        %848 = vmatprep.subr.bf16.mxu0 0
        %849 = vmatpush1.bf16.msra.mxu0 0
        %850 = vmatprep.subr.bf16.mxu0 0
        %851 = vmatpush1.bf16.msra.mxu0 0
        %852 = vmatprep.subr.bf16.mxu0 0
        %853 = vmatpush1.bf16.msra.mxu0 0
        %854 = vmatprep.subr.bf16.mxu0 0
        %855 = vmatpush1.bf16.msra.mxu0 0
        %856 = vmatprep.subr.bf16.mxu0 0
        %857 = vmatpush1.bf16.msra.mxu0 0
        %858 = vmatprep.subr.bf16.mxu0 0
        %859 = vmatpush1.bf16.msra.mxu0 0
        %860 = vmatprep.mubr.bf16.mxu0 0
        %861 = vmatmul.mubr.bf16.gmra.mrb[0].mxu0 %v814
        %v862 = vpop.f32.mrb[0].mxu0
        %v863 = vadd.f32 0.0, %v862
        %v864 = vpop.f32.mrb[0].mxu0
        %v865 = vpop.f32.mrb[0].mxu0
        %v866 = vadd.f32 0.0, %v865
        %v867 = vpop.f32.mrb[0].mxu0
        %868 = vmatprep.mubr.bf16.mxu0 0
        %869 = vmatmul.mubr.bf16.gmra.mrb[0].mxu0 %v817
        %v870 = vpop.f32.mrb[0].mxu0
        %v871 = vadd.f32 0.0, %v870
        %v872 = vpop.f32.mrb[0].mxu0
        %v873 = vpop.f32.mrb[0].mxu0
        %v874 = vadd.f32 0.0, %v873
        %v875 = vpop.f32.mrb[0].mxu0
        %876 = vmatprep.mubr.bf16.mxu0 0
        %877 = vmatmul.mubr.bf16.gmra.mrb[0].mxu0 %v820
        %v878 = vpop.f32.mrb[0].mxu0
        %v879 = vadd.f32 0.0, %v878
        %v880 = vpop.f32.mrb[0].mxu0
        %v881 = vpop.f32.mrb[0].mxu0
        %v882 = vadd.f32 0.0, %v881
        %v883 = vpop.f32.mrb[0].mxu0
        %884 = vmatprep.mubr.bf16.mxu0 0
        %885 = vmatmul.mubr.bf16.gmra.mrb[0].mxu0 %v823
        %v886 = vpop.f32.mrb[0].mxu0
        %v887 = vadd.f32 0.0, %v886
        %v888 = vpop.f32.mrb[0].mxu0
        %v889 = vpop.f32.mrb[0].mxu0
        %v890 = vadd.f32 0.0, %v889
        %v891 = vpop.f32.mrb[0].mxu0
        %892 = vdwg.mxu0
        %v893 = vadd.f32 %v791, %v863
        %v894 = vadd.f32 %v792, %v866
        %v895 = vadd.f32 %v793, %v871
        %v896 = vadd.f32 %v794, %v874
        %v897 = vadd.f32 %v795, %v879
        %v898 = vadd.f32 %v796, %v882
        %v899 = vadd.f32 %v797, %v887
        %v900 = vadd.f32 %v798, %v890
        %s901 = scalar_lea.vmem %s286, 16
        %v902 = vld [vmem:[%s901] sm:$0xff]
        %v903 = vld [vmem:[%s901 + $0x10] sm:$0xff]
        %v904 = vld [vmem:[%s901 + $0x20] sm:$0xff]
        %v905 = vld [vmem:[%s901 + $0x30] sm:$0xff]
        %v906 = vld [vmem:[%s901 + $0x40] sm:$0xff]
        %v907 = vld [vmem:[%s901 + $0x50] sm:$0xff]
        %v908 = vld [vmem:[%s901 + $0x60] sm:$0xff]
        %v909 = vld [vmem:[%s901 + $0x70] sm:$0xff]
        %v910 = vpack.c.bf16 %v903, %v902
        %v911 = vpack.c.bf16 %v905, %v904
        %v912 = vpack.c.bf16 %v907, %v906
        %v913 = vpack.c.bf16 %v909, %v908
        %s914 = scalar_lea.vmem %s1, 12
        %v915 = vld [vmem:[%s914] sm:$0x3]
        %v917 = vsel %vm326, %v910, 0
        %v920 = vsel %vm326, %v911, 0
        %v923 = vsel %vm326, %v912, 0
        %v926 = vsel %vm326, %v913, 0
        %v929 = vand.u32 %v915, %v342
        %931 = vmatprep.subr.bf16.mxu0 0
        %932 = vmatpush1.bf16.msra.mxu0 %v929
        %933 = vmatprep.subr.bf16.mxu0 0
        %934 = vmatpush1.bf16.msra.mxu0 0
        %935 = vmatprep.subr.bf16.mxu0 0
        %936 = vmatpush1.bf16.msra.mxu0 0
        %937 = vmatprep.subr.bf16.mxu0 0
        %938 = vmatpush1.bf16.msra.mxu0 0
        %939 = vmatprep.subr.bf16.mxu0 0
        %940 = vmatpush1.bf16.msra.mxu0 0
        %941 = vmatprep.subr.bf16.mxu0 0
        %942 = vmatpush1.bf16.msra.mxu0 0
        %943 = vmatprep.subr.bf16.mxu0 0
        %944 = vmatpush1.bf16.msra.mxu0 0
        %945 = vmatprep.subr.bf16.mxu0 0
        %946 = vmatpush1.bf16.msra.mxu0 0
        %947 = vmatprep.subr.bf16.mxu0 0
        %948 = vmatpush1.bf16.msra.mxu0 0
        %949 = vmatprep.subr.bf16.mxu0 0
        %950 = vmatpush1.bf16.msra.mxu0 0
        %951 = vmatprep.subr.bf16.mxu0 0
        %952 = vmatpush1.bf16.msra.mxu0 0
        %953 = vmatprep.subr.bf16.mxu0 0
        %954 = vmatpush1.bf16.msra.mxu0 0
        %955 = vmatprep.subr.bf16.mxu0 0
        %956 = vmatpush1.bf16.msra.mxu0 0
        %957 = vmatprep.subr.bf16.mxu0 0
        %958 = vmatpush1.bf16.msra.mxu0 0
        %959 = vmatprep.subr.bf16.mxu0 0
        %960 = vmatpush1.bf16.msra.mxu0 0
        %961 = vmatprep.subr.bf16.mxu0 0
        %962 = vmatpush1.bf16.msra.mxu0 0
        %963 = vmatprep.mubr.bf16.mxu0 0
        %964 = vmatmul.mubr.bf16.gmra.mrb[0].mxu0 %v917
        %v965 = vpop.f32.mrb[0].mxu0
        %v966 = vadd.f32 0.0, %v965
        %v967 = vpop.f32.mrb[0].mxu0
        %v968 = vpop.f32.mrb[0].mxu0
        %v969 = vadd.f32 0.0, %v968
        %v970 = vpop.f32.mrb[0].mxu0
        %971 = vmatprep.mubr.bf16.mxu0 0
        %972 = vmatmul.mubr.bf16.gmra.mrb[0].mxu0 %v920
        %v973 = vpop.f32.mrb[0].mxu0
        %v974 = vadd.f32 0.0, %v973
        %v975 = vpop.f32.mrb[0].mxu0
        %v976 = vpop.f32.mrb[0].mxu0
        %v977 = vadd.f32 0.0, %v976
        %v978 = vpop.f32.mrb[0].mxu0
        %979 = vmatprep.mubr.bf16.mxu0 0
        %980 = vmatmul.mubr.bf16.gmra.mrb[0].mxu0 %v923
        %v981 = vpop.f32.mrb[0].mxu0
        %v982 = vadd.f32 0.0, %v981
        %v983 = vpop.f32.mrb[0].mxu0
        %v984 = vpop.f32.mrb[0].mxu0
        %v985 = vadd.f32 0.0, %v984
        %v986 = vpop.f32.mrb[0].mxu0
        %987 = vmatprep.mubr.bf16.mxu0 0
        %988 = vmatmul.mubr.bf16.gmra.mrb[0].mxu0 %v926
        %v989 = vpop.f32.mrb[0].mxu0
        %v990 = vadd.f32 0.0, %v989
        %v991 = vpop.f32.mrb[0].mxu0
        %v992 = vpop.f32.mrb[0].mxu0
        %v993 = vadd.f32 0.0, %v992
        %v994 = vpop.f32.mrb[0].mxu0
        %995 = vdwg.mxu0
        %v996 = vadd.f32 %v893, %v966
        %v997 = vadd.f32 %v894, %v969
        %v998 = vadd.f32 %v895, %v974
        %v999 = vadd.f32 %v896, %v977
        %v1000 = vadd.f32 %v897, %v982
        %v1001 = vadd.f32 %v898, %v985
        %v1002 = vadd.f32 %v899, %v990
        %v1003 = vadd.f32 %v900, %v993
        %s1004 = scalar_lea.vmem %s286, 160
        %v1005 = vld [vmem:[%s1004] sm:$0xff]
        %v1006 = vld [vmem:[%s1004 + $0x10] sm:$0xff]
        %v1007 = vld [vmem:[%s1004 + $0x20] sm:$0xff]
        %v1008 = vld [vmem:[%s1004 + $0x30] sm:$0xff]
        %v1009 = vld [vmem:[%s1004 + $0x40] sm:$0xff]
        %v1010 = vld [vmem:[%s1004 + $0x50] sm:$0xff]
        %v1011 = vld [vmem:[%s1004 + $0x60] sm:$0xff]
        %v1012 = vld [vmem:[%s1004 + $0x70] sm:$0xff]
        %v1013 = vpack.c.bf16 %v1006, %v1005
        %v1014 = vpack.c.bf16 %v1008, %v1007
        %v1015 = vpack.c.bf16 %v1010, %v1009
        %v1016 = vpack.c.bf16 %v1012, %v1011
        %s1017 = scalar_lea.vmem %s1, 14
        %v1018 = vld [vmem:[%s1017] sm:$0x3]
        %v1020 = vsel %vm326, %v1013, 0
        %v1023 = vsel %vm326, %v1014, 0
        %v1026 = vsel %vm326, %v1015, 0
        %v1029 = vsel %vm326, %v1016, 0
        %v1032 = vand.u32 %v1018, %v342
        %1034 = vmatprep.subr.bf16.mxu0 0
        %1035 = vmatpush1.bf16.msra.mxu0 %v1032
        %1036 = vmatprep.subr.bf16.mxu0 0
        %1037 = vmatpush1.bf16.msra.mxu0 0
        %1038 = vmatprep.subr.bf16.mxu0 0
        %1039 = vmatpush1.bf16.msra.mxu0 0
        %1040 = vmatprep.subr.bf16.mxu0 0
        %1041 = vmatpush1.bf16.msra.mxu0 0
        %1042 = vmatprep.subr.bf16.mxu0 0
        %1043 = vmatpush1.bf16.msra.mxu0 0
        %1044 = vmatprep.subr.bf16.mxu0 0
        %1045 = vmatpush1.bf16.msra.mxu0 0
        %1046 = vmatprep.subr.bf16.mxu0 0
        %1047 = vmatpush1.bf16.msra.mxu0 0
        %1048 = vmatprep.subr.bf16.mxu0 0
        %1049 = vmatpush1.bf16.msra.mxu0 0
        %1050 = vmatprep.subr.bf16.mxu0 0
        %1051 = vmatpush1.bf16.msra.mxu0 0
        %1052 = vmatprep.subr.bf16.mxu0 0
        %1053 = vmatpush1.bf16.msra.mxu0 0
        %1054 = vmatprep.subr.bf16.mxu0 0
        %1055 = vmatpush1.bf16.msra.mxu0 0
        %1056 = vmatprep.subr.bf16.mxu0 0
        %1057 = vmatpush1.bf16.msra.mxu0 0
        %1058 = vmatprep.subr.bf16.mxu0 0
        %1059 = vmatpush1.bf16.msra.mxu0 0
        %1060 = vmatprep.subr.bf16.mxu0 0
        %1061 = vmatpush1.bf16.msra.mxu0 0
        %1062 = vmatprep.subr.bf16.mxu0 0
        %1063 = vmatpush1.bf16.msra.mxu0 0
        %1064 = vmatprep.subr.bf16.mxu0 0
        %1065 = vmatpush1.bf16.msra.mxu0 0
        %1066 = vmatprep.mubr.bf16.mxu0 0
        %1067 = vmatmul.mubr.bf16.gmra.mrb[0].mxu0 %v1020
        %v1068 = vpop.f32.mrb[0].mxu0
        %v1069 = vadd.f32 0.0, %v1068
        %v1070 = vpop.f32.mrb[0].mxu0
        %v1071 = vpop.f32.mrb[0].mxu0
        %v1072 = vadd.f32 0.0, %v1071
        %v1073 = vpop.f32.mrb[0].mxu0
        %1074 = vmatprep.mubr.bf16.mxu0 0
        %1075 = vmatmul.mubr.bf16.gmra.mrb[0].mxu0 %v1023
        %v1076 = vpop.f32.mrb[0].mxu0
        %v1077 = vadd.f32 0.0, %v1076
        %v1078 = vpop.f32.mrb[0].mxu0
        %v1079 = vpop.f32.mrb[0].mxu0
        %v1080 = vadd.f32 0.0, %v1079
        %v1081 = vpop.f32.mrb[0].mxu0
        %1082 = vmatprep.mubr.bf16.mxu0 0
        %1083 = vmatmul.mubr.bf16.gmra.mrb[0].mxu0 %v1026
        %v1084 = vpop.f32.mrb[0].mxu0
        %v1085 = vadd.f32 0.0, %v1084
        %v1086 = vpop.f32.mrb[0].mxu0
        %v1087 = vpop.f32.mrb[0].mxu0
        %v1088 = vadd.f32 0.0, %v1087
        %v1089 = vpop.f32.mrb[0].mxu0
        %1090 = vmatprep.mubr.bf16.mxu0 0
        %1091 = vmatmul.mubr.bf16.gmra.mrb[0].mxu0 %v1029
        %v1092 = vpop.f32.mrb[0].mxu0
        %v1093 = vadd.f32 0.0, %v1092
        %v1094 = vpop.f32.mrb[0].mxu0
        %v1095 = vpop.f32.mrb[0].mxu0
        %v1096 = vadd.f32 0.0, %v1095
        %v1097 = vpop.f32.mrb[0].mxu0
        %1098 = vdwg.mxu0
        %v1099 = vadd.f32 %v996, %v1069
        %v1100 = vadd.f32 %v997, %v1072
        %v1101 = vadd.f32 %v998, %v1077
        %v1102 = vadd.f32 %v999, %v1080
        %v1103 = vadd.f32 %v1000, %v1085
        %v1104 = vadd.f32 %v1001, %v1088
        %v1105 = vadd.f32 %v1002, %v1093
        %v1106 = vadd.f32 %v1003, %v1096
        %v1107 = vld [vmem:[%s901 + $0x1] sm:$0xff]
        %v1108 = vld [vmem:[%s901 + $0x11] sm:$0xff]
        %v1109 = vld [vmem:[%s901 + $0x21] sm:$0xff]
        %v1110 = vld [vmem:[%s901 + $0x31] sm:$0xff]
        %v1111 = vld [vmem:[%s901 + $0x41] sm:$0xff]
        %v1112 = vld [vmem:[%s901 + $0x51] sm:$0xff]
        %v1113 = vld [vmem:[%s901 + $0x61] sm:$0xff]
        %v1114 = vld [vmem:[%s901 + $0x71] sm:$0xff]
        %v1115 = vpack.c.bf16 %v1108, %v1107
        %v1116 = vpack.c.bf16 %v1110, %v1109
        %v1117 = vpack.c.bf16 %v1112, %v1111
        %v1118 = vpack.c.bf16 %v1114, %v1113
        %s1119 = scalar_lea.vmem %s1, 16
        %v1120 = vld [vmem:[%s1119] sm:$0x3]
        %v1122 = vsel %vm326, %v1115, 0
        %v1125 = vsel %vm326, %v1116, 0
        %v1128 = vsel %vm326, %v1117, 0
        %v1131 = vsel %vm326, %v1118, 0
        %v1134 = vand.u32 %v1120, %v342
        %1136 = vmatprep.subr.bf16.mxu0 0
        %1137 = vmatpush1.bf16.msra.mxu0 %v1134
        %1138 = vmatprep.subr.bf16.mxu0 0
        %1139 = vmatpush1.bf16.msra.mxu0 0
        %1140 = vmatprep.subr.bf16.mxu0 0
        %1141 = vmatpush1.bf16.msra.mxu0 0
        %1142 = vmatprep.subr.bf16.mxu0 0
        %1143 = vmatpush1.bf16.msra.mxu0 0
        %1144 = vmatprep.subr.bf16.mxu0 0
        %1145 = vmatpush1.bf16.msra.mxu0 0
        %1146 = vmatprep.subr.bf16.mxu0 0
        %1147 = vmatpush1.bf16.msra.mxu0 0
        %1148 = vmatprep.subr.bf16.mxu0 0
        %1149 = vmatpush1.bf16.msra.mxu0 0
        %1150 = vmatprep.subr.bf16.mxu0 0
        %1151 = vmatpush1.bf16.msra.mxu0 0
        %1152 = vmatprep.subr.bf16.mxu0 0
        %1153 = vmatpush1.bf16.msra.mxu0 0
        %1154 = vmatprep.subr.bf16.mxu0 0
        %1155 = vmatpush1.bf16.msra.mxu0 0
        %1156 = vmatprep.subr.bf16.mxu0 0
        %1157 = vmatpush1.bf16.msra.mxu0 0
        %1158 = vmatprep.subr.bf16.mxu0 0
        %1159 = vmatpush1.bf16.msra.mxu0 0
        %1160 = vmatprep.subr.bf16.mxu0 0
        %1161 = vmatpush1.bf16.msra.mxu0 0
        %1162 = vmatprep.subr.bf16.mxu0 0
        %1163 = vmatpush1.bf16.msra.mxu0 0
        %1164 = vmatprep.subr.bf16.mxu0 0
        %1165 = vmatpush1.bf16.msra.mxu0 0
        %1166 = vmatprep.subr.bf16.mxu0 0
        %1167 = vmatpush1.bf16.msra.mxu0 0
        %1168 = vmatprep.mubr.bf16.mxu0 0
        %1169 = vmatmul.mubr.bf16.gmra.mrb[0].mxu0 %v1122
        %v1170 = vpop.f32.mrb[0].mxu0
        %v1171 = vadd.f32 0.0, %v1170
        %v1172 = vpop.f32.mrb[0].mxu0
        %v1173 = vpop.f32.mrb[0].mxu0
        %v1174 = vadd.f32 0.0, %v1173
        %v1175 = vpop.f32.mrb[0].mxu0
        %1176 = vmatprep.mubr.bf16.mxu0 0
        %1177 = vmatmul.mubr.bf16.gmra.mrb[0].mxu0 %v1125
        %v1178 = vpop.f32.mrb[0].mxu0
        %v1179 = vadd.f32 0.0, %v1178
        %v1180 = vpop.f32.mrb[0].mxu0
        %v1181 = vpop.f32.mrb[0].mxu0
        %v1182 = vadd.f32 0.0, %v1181
        %v1183 = vpop.f32.mrb[0].mxu0
        %1184 = vmatprep.mubr.bf16.mxu0 0
        %1185 = vmatmul.mubr.bf16.gmra.mrb[0].mxu0 %v1128
        %v1186 = vpop.f32.mrb[0].mxu0
        %v1187 = vadd.f32 0.0, %v1186
        %v1188 = vpop.f32.mrb[0].mxu0
        %v1189 = vpop.f32.mrb[0].mxu0
        %v1190 = vadd.f32 0.0, %v1189
        %v1191 = vpop.f32.mrb[0].mxu0
        %1192 = vmatprep.mubr.bf16.mxu0 0
        %1193 = vmatmul.mubr.bf16.gmra.mrb[0].mxu0 %v1131
        %v1194 = vpop.f32.mrb[0].mxu0
        %v1195 = vadd.f32 0.0, %v1194
        %v1196 = vpop.f32.mrb[0].mxu0
        %v1197 = vpop.f32.mrb[0].mxu0
        %v1198 = vadd.f32 0.0, %v1197
        %v1199 = vpop.f32.mrb[0].mxu0
        %1200 = vdwg.mxu0
        %v1201 = vadd.f32 %v1099, %v1171
        %v1202 = vadd.f32 %v1100, %v1174
        %v1203 = vadd.f32 %v1101, %v1179
        %v1204 = vadd.f32 %v1102, %v1182
        %v1205 = vadd.f32 %v1103, %v1187
        %v1206 = vadd.f32 %v1104, %v1190
        %v1207 = vadd.f32 %v1105, %v1195
        %v1208 = vadd.f32 %v1106, %v1198
        %v1209 = vld [vmem:[%s2] sm:$0x1]
        %v1211 = vlaneseq
        %v1212 = vshrl.u32 %v1211, 7
        %v1213 = vsub.s32 0, %v1212
        %v1214 = vrot.slane %v1209, %v1213
        %v1216 = vadd.f32 %v1201, %v1214
        %v1217 = vadd.f32 %v1202, %v1214
        %v1218 = vadd.f32 %v1203, %v1214
        %v1219 = vadd.f32 %v1204, %v1214
        %v1220 = vadd.f32 %v1205, %v1214
        %v1221 = vadd.f32 %v1206, %v1214
        %v1222 = vadd.f32 %v1207, %v1214
        %v1223 = vadd.f32 %v1208, %v1214
        %v1224 = vmax.f32 %v1216, 0.0
        %v1225 = vmax.f32 %v1217, 0.0
        %v1226 = vmax.f32 %v1218, 0.0
        %v1227 = vmax.f32 %v1219, 0.0
        %v1228 = vmax.f32 %v1220, 0.0
        %v1229 = vmax.f32 %v1221, 0.0
        %v1230 = vmax.f32 %v1222, 0.0
        %v1231 = vmax.f32 %v1223, 0.0
        %vm1232 = vcmask 130048
        %v1233 = vsel %vm1232, %v1224, 0.0
        %v1234 = vsel %vm1232, %v1225, 0.0
        %v1235 = vadd.f32 %v1233, %v1234
        %v1236 = vsel %vm1232, %v1226, 0.0
        %v1237 = vadd.f32 %v1235, %v1236
        %v1238 = vsel %vm1232, %v1227, 0.0
        %v1239 = vadd.f32 %v1237, %v1238
        %v1240 = vsel %vm1232, %v1228, 0.0
        %v1241 = vadd.f32 %v1239, %v1240
        %v1242 = vsel %vm1232, %v1229, 0.0
        %v1243 = vadd.f32 %v1241, %v1242
        %v1244 = vsel %vm1232, %v1230, 0.0
        %v1245 = vadd.f32 %v1243, %v1244
        %v1246 = vsel %vm1232, %v1231, 0.0
        %v1247 = vadd.f32 %v1245, %v1246
        %v1248 = vrot.slane %v1247, 4
        %v1249 = vadd.f32 %v1247, %v1248
        %v1250 = vrot.slane %v1249, 2
        %v1251 = vadd.f32 %v1249, %v1250
        %v1252 = vrot.slane %v1251, 1
        %v1253 = vadd.f32 %v1251, %v1252
        %v1254 = vmul.f32 %v1224, %v1224
        %v1255 = vmul.f32 %v1225, %v1225
        %v1256 = vmul.f32 %v1226, %v1226
        %v1257 = vmul.f32 %v1227, %v1227
        %v1258 = vmul.f32 %v1228, %v1228
        %v1259 = vmul.f32 %v1229, %v1229
        %v1260 = vmul.f32 %v1230, %v1230
        %v1261 = vmul.f32 %v1231, %v1231
        %v1262 = vsel %vm1232, %v1254, 0.0
        %v1263 = vsel %vm1232, %v1255, 0.0
        %v1264 = vadd.f32 %v1262, %v1263
        %v1265 = vsel %vm1232, %v1256, 0.0
        %v1266 = vadd.f32 %v1264, %v1265
        %v1267 = vsel %vm1232, %v1257, 0.0
        %v1268 = vadd.f32 %v1266, %v1267
        %v1269 = vsel %vm1232, %v1258, 0.0
        %v1270 = vadd.f32 %v1268, %v1269
        %v1271 = vsel %vm1232, %v1259, 0.0
        %v1272 = vadd.f32 %v1270, %v1271
        %v1273 = vsel %vm1232, %v1260, 0.0
        %v1274 = vadd.f32 %v1272, %v1273
        %v1275 = vsel %vm1232, %v1261, 0.0
        %v1276 = vadd.f32 %v1274, %v1275
        %v1277 = vrot.slane %v1276, 4
        %v1278 = vadd.f32 %v1276, %v1277
        %v1279 = vrot.slane %v1278, 2
        %v1280 = vadd.f32 %v1278, %v1279
        %v1281 = vrot.slane %v1280, 1
        %v1282 = vadd.f32 %v1280, %v1281
        %v1283 = vmul.f32 %v1253, 0.015625
        %v1284 = vmul.f32 %v1253, %v1283
        %v1285 = vsub.f32 %v1282, %v1284
        %v1286 = vmax.f32 %v1285, 0.0
        %v1287 = vmul.f32 %v1286, 0.015873017
        %v1288 = vadd.f32 %v1287, 1e-05
        %v1289 = vrsqrt.pop %v1288
        %v1290 = vmul.f32 %v1288, %v1289
        %v1291 = vld [vmem:[%s296] sm:$0x1]
        %v1292 = vmul.f32 %v1291, %v1283
        %v1293 = vsub.f32 1.0, %v1291
        %v1294 = vld [vmem:[%s290] sm:$0x1]
        %v1295 = vmul.f32 %v1293, %v1294
        %v1296 = vadd.f32 %v1292, %v1295
        %v1297 = vmul.f32 %v1291, %v1290
        %v1298 = vld [vmem:[%s293] sm:$0x1]
        %v1299 = vmul.f32 %v1293, %v1298
        %v1300 = vadd.f32 %v1297, %v1299
        %v1301 = vmul.f32 %v1300, %v1289
        %v1302 = vmul.f32 %v1283, %v1301
        %v1303 = vsub.f32 %v1296, %v1302
        %v1305 = vlaneseq
        %v1306 = vshrl.u32 %v1305, 7
        %v1307 = vsub.s32 0, %v1306
        %v1308 = vrot.slane %v1301, %v1307
        %v1310 = vmul.f32 %v1224, %v1308
        %v1311 = vmul.f32 %v1225, %v1308
        %v1312 = vmul.f32 %v1226, %v1308
        %v1313 = vmul.f32 %v1227, %v1308
        %v1314 = vmul.f32 %v1228, %v1308
        %v1315 = vmul.f32 %v1229, %v1308
        %v1316 = vmul.f32 %v1230, %v1308
        %v1317 = vmul.f32 %v1231, %v1308
        %v1319 = vlaneseq
        %v1320 = vshrl.u32 %v1319, 7
        %v1321 = vsub.s32 0, %v1320
        %v1322 = vrot.slane %v1303, %v1321
        %v1324 = vadd.f32 %v1310, %v1322
        %v1325 = vadd.f32 %v1311, %v1322
        %v1326 = vadd.f32 %v1312, %v1322
        %v1327 = vadd.f32 %v1313, %v1322
        %v1328 = vadd.f32 %v1314, %v1322
        %v1329 = vadd.f32 %v1315, %v1322
        %v1330 = vadd.f32 %v1316, %v1322
        %v1331 = vadd.f32 %v1317, %v1322
        %v1332 = vmax.f32 %v1324, 0.0
        %v1333 = vmax.f32 %v1325, 0.0
        %v1334 = vmax.f32 %v1326, 0.0
        %v1335 = vmax.f32 %v1327, 0.0
        %v1336 = vmax.f32 %v1328, 0.0
        %v1337 = vmax.f32 %v1329, 0.0
        %v1338 = vmax.f32 %v1330, 0.0
        %v1339 = vmax.f32 %v1331, 0.0
        %1340 = vst.msk [vmem:[%s280] sm:$0xff] %vm1232, %v1332
        %1341 = vst.msk [vmem:[%s280 + $0x8] sm:$0xff] %vm1232, %v1333
        %1342 = vst.msk [vmem:[%s280 + $0x10] sm:$0xff] %vm1232, %v1334
        %1343 = vst.msk [vmem:[%s280 + $0x18] sm:$0xff] %vm1232, %v1335
        %1344 = vst.msk [vmem:[%s280 + $0x20] sm:$0xff] %vm1232, %v1336
        %1345 = vst.msk [vmem:[%s280 + $0x28] sm:$0xff] %vm1232, %v1337
        %1346 = vst.msk [vmem:[%s280 + $0x30] sm:$0xff] %vm1232, %v1338
        %1347 = vst.msk [vmem:[%s280 + $0x38] sm:$0xff] %vm1232, %v1339
        %s1348 = sand.u32 %s174, 1
        %s1349 = scalar_lea.sflag [#allocation3], %s1348
        %s1350 = sand.u32 %s174, 1
        %s1351 = smul.addr %s1350, 64
        %s1352 = scalar_lea.vmem [#allocation2], %s1351
        // Predicated region
        $region45: #{tpu_custom_call.1} parent=43 // pred_check
          %p1353 = pneg %p184
        $region46: #{tpu_custom_call.1} parent=43 // pred_check_branch
          %1355 = sbr.rel (%p1353) target = $region48
        $region47: #{tpu_custom_call.1} parent=43 // pred_region
          %s1357 = ssub.s32 1024, 1024
          %1358 = vsyncadd %s1349, %s1357
          %s1359 = smul.addr %s20, 8
          %s1360 = smul.addr %s1359, 128
          %s1361 = scalar_lea.hbm %s6, %s1360
          %s1362 = sshll.u32 %s1352, 4
          %s1363 = int_to_ptr.vmem [resolvable:$true] %s1362
          %1368 = dma.vmem_to_hbm [thread:$0]  %s1363, 1024, %s1361, %s1349, 128, 128, 8
        $region48: #{tpu_custom_call.1} parent=43 // pred_fallthru
          _
      $region44: #{tpu_custom_call.1} parent=5 // pred_fallthru
        _
      %p1369 = scmp.le.s32.totalorder 2, %s15
      // Predicated region
      $region49: #{tpu_custom_call.1} parent=5 // pred_check
        %p1370 = pneg %p1369
      $region50: #{tpu_custom_call.1} parent=5 // pred_check_branch
        %1372 = sbr.rel (%p1370) target = $region52
      $region51: #{tpu_custom_call.1} parent=5 // pred_region
        %s1373 = ssub.s32 %s15, 2
        // Predicated region
        $region53: #{tpu_custom_call.1} parent=51 // pred_check
          %p1374 = pneg %p190
        $region54: #{tpu_custom_call.1} parent=51 // pred_check_branch
          %1376 = sbr.rel (%p1374) target = $region56
        $region55: #{tpu_custom_call.1} parent=51 // pred_region
          %s1377 = sand.u32 %s175, 1
          %s1378 = scalar_lea.sflag [#allocation3], %s1377
          %s1379 = sand.u32 %s175, 1
          %s1380 = smul.addr %s1379, 64
          %s1381 = scalar_lea.vmem [#allocation2], %s1380
          %1382 = dma.done %s1378, 1024
        $region56: #{tpu_custom_call.1} parent=51 // pred_fallthru
          _
      $region52: #{tpu_custom_call.1} parent=5 // pred_fallthru
        _
    $region6: #{tpu_custom_call.1} parent=1 // loop_footer
      %s19 = sadd.s32 1, %s15
    $region7: #{tpu_custom_call.1} parent=1 // loop_footer_branch
      %14 = sbr.rel target = $region3
    $region8: #{tpu_custom_call.1} parent=1 // loop_exit
      _
    %1383 = vsyncpa [#allocation3], 1
    %s1384 = scalar_lea.sflag [#allocation3], 1
    %1385 = vsyncpa %s1384, 1

</llo_original>
